<compile_context>
chip_gen: v5e
topology: v5e:2x2
jax: 0.10.0
libtpu: 0.0.40
codegen_flags: <defaults>
</compile_context>

<pallas_src>
import functools
import math

import jax
import jax.numpy as jnp
from jax import lax
from jax.experimental import pallas as pl
from jax.experimental.pallas import tpu as pltpu

_BIG = 1e30  # "+inf" stand-in that stays finite under (x - min) * (1/gamma_p)


def _dot(a, b):
    return jnp.dot(a, b, preferred_element_type=jnp.float32)


def _dot_nt(a, b):  # a @ b.T without materialising the transpose (MXU NT form)
    return lax.dot_general(a, b, (((1,), (1,)), ((), ())),
                           preferred_element_type=jnp.float32)


def _sum_all(x):  # full reduction kept 2-D -> (1, 1)
    return jnp.sum(jnp.sum(x, axis=1, keepdims=True), axis=0, keepdims=True)


def _fused_gw_kernel(lam_ref, out1_ref, out2_ref, adj1_ref, adj2_ref,
                     s_ref, stats_ref,
                     *, n1, n2, gw_weight, gamma_p, in_iter, out_iter):
    f32 = jnp.float32
    out1 = out1_ref[...].astype(f32)          # (N1, d)   rows >= n1 are zero
    out2 = out2_ref[...].astype(f32)          # (N2, d)   rows >= n2 are zero
    adj1 = adj1_ref[...].astype(f32)          # (N1, N1)  zero outside valid
    adj2 = adj2_ref[...].astype(f32)          # (N2, N2)
    lam0 = lam_ref[...]                       # (1, 1) current threshold_lambda

    N1 = out1.shape[0]
    N2 = out2.shape[0]
    inv_gamma = 1.0 / gamma_p
    gla = gamma_p * math.log(1.0 / n1)        # gamma_p * log(a)
    glb = gamma_p * math.log(1.0 / n2)        # gamma_p * log(b)

    # Validity masks for padded sublanes / lanes.
    row_ok = lax.broadcasted_iota(jnp.int32, (N1, N2), 0) < n1
    col_ok = lax.broadcasted_iota(jnp.int32, (N1, N2), 1) < n2
    valid = jnp.logical_and(row_ok, col_ok)
    col_ok_v = lax.broadcasted_iota(jnp.int32, (1, N2), 1) < n2
    b_vec = jnp.where(col_ok_v, 1.0 / n2, 0.0).astype(f32)        # (1, N2)

    # ---- cost matrices (MXU matmuls + elementwise exp) ----
    inter_c = jnp.where(valid, jnp.exp(-_dot_nt(out1, out2)), 0.0)   # (N1, N2)
    intra_c1 = jnp.exp(-_dot_nt(out1, out1)) * adj1                  # (N1, N1)
    intra_c2 = jnp.exp(-_dot_nt(out2, out2)) * adj2                  # (N2, N2)
    ic1_sq = intra_c1 * intra_c1
    ic2_sq = intra_c2 * intra_c2

    # ---- stabilized Sinkhorn (sinkhorn_stable) ----
    def outer_body(_, carry):
        s, g = carry
        # Marginals of (s - lambda) on the valid region via algebra:
        # padded rows/cols of s are exactly 0, and the garbage entries that the
        # un-masked shift creates in the padded region are annihilated by the
        # zero rows/cols of intra_c1 / intra_c2 / ic*_sq in the matmuls below.
        a_hat = jnp.sum(s, axis=1, keepdims=True) - float(n2) * lam0   # (N1,1)
        b_hat = jnp.sum(s, axis=0, keepdims=True) - float(n1) * lam0   # (1,N2)
        s_shift = s - lam0
        temp = _dot(ic1_sq, a_hat) + _dot(b_hat, ic2_sq)               # (N1,N2)
        L = temp - 2.0 * _dot_nt(_dot(intra_c1, s_shift), intra_c2)
        Q = inter_c + gw_weight * L

        # Padding masks hoisted out of the inner loop (review #2); |f|,|g| are
        # tiny compared to _BIG so the padded entries keep dominating.
        q_cols = jnp.where(col_ok, Q, _BIG)    # row (f) update: mask pad cols
        q_rows = jnp.where(row_ok, Q, _BIG)    # col (g) update: mask pad rows

        pc = None
        w = None
        # in_iter is a small static int (5); unrolled body only keeps ~12 vregs
        # of live state (the N2^2 invariants are not touched here).
        for _ in range(in_iter):
            # f = soft_min_row(Q - g) + gamma_p*log(a)
            zr = q_cols - g
            hr = jnp.min(zr, axis=1, keepdims=True)                    # (N1,1)
            pr = jnp.exp((hr - zr) * inv_gamma)
            f = (hr - gamma_p * jnp.log(jnp.sum(pr, axis=1, keepdims=True))
                 + gla)
            # g = soft_min_col(Q - f) + gamma_p*log(b)
            zc = q_rows - f
            hc = jnp.min(zc, axis=0, keepdims=True)                    # (1,N2)
            pc = jnp.exp((hc - zc) * inv_gamma)
            csum = jnp.sum(pc, axis=0, keepdims=True)                  # >= 1
            g = hc - gamma_p * jnp.log(csum) + glb
            w = b_vec / csum      # = exp((g - hc)/gamma_p) on valid columns

        # Exact identity: exp((f + g - Q)/gamma_p) == pc * w, so the reference
        # s-update needs no extra full-matrix exp; padded region stays 0
        # (pc==0 on padded rows, w==0 on padded cols).
        s_new = 0.05 * s + 0.95 * (pc * w)
        return (s_new, g)

    s0 = jnp.where(valid, 1.0 / (n1 * n2), 0.0).astype(f32)
    g0 = jnp.full((1, N2), 1.0 / n2, f32)
    # Outer loop kept rolled to bound code size; body is large enough to hide
    # loop overhead.
    s, _ = lax.fori_loop(0, out_iter, outer_body, (s0, g0))

    # ---- update_lambda (ones-matrix matmuls eliminated algebraically) ----
    # mid[i,j] = rowsum(ic1_sq)[i]*n2 + colsum(ic2_sq)[j]*n1
    #            - 2*rowsum(intra_c1)[i]*rowsum(intra_c2)[j]
    r1s = jnp.sum(ic1_sq, axis=1, keepdims=True)              # (N1, 1)
    c2s = jnp.sum(ic2_sq, axis=0, keepdims=True)              # (1, N2)
    rc1 = jnp.sum(intra_c1, axis=1, keepdims=True)            # (N1, 1)
    rc2 = jnp.sum(intra_c2, axis=1, keepdims=True)            # (N2, 1)
    srow = jnp.sum(s, axis=1, keepdims=True)                  # (N1, 1)
    scol = jnp.sum(s, axis=0, keepdims=True)                  # (1, N2)

    k1 = _sum_all(inter_c)
    k2 = (float(n2) * _sum_all(r1s * srow)
          + float(n1) * _sum_all(c2s * scol)
          - 2.0 * _sum_all(rc1 * _dot(s, rc2)))
    k3 = (float(n2 * n2) * _sum_all(ic1_sq)
          + float(n1 * n1) * _sum_all(ic2_sq)
          - 2.0 * _sum_all(intra_c1) * _sum_all(intra_c2))
    lam_upd = (k1 + 2.0 * gw_weight * k2) / (2.0 * gw_weight * k3)
    lam_new = 0.05 * lam_upd + 0.95 * lam0                    # (1, 1)

    # ---- losses ----
    s_hat = jnp.where(valid, s - lam_new, 0.0)
    w_loss = _sum_all(inter_c * s_hat)
    a_s = jnp.sum(s_hat, axis=1, keepdims=True)               # (N1, 1)
    b_s = jnp.sum(s_hat, axis=0, keepdims=True)               # (1, N2)
    gw_mat = (_dot(ic1_sq, a_s) + _dot(b_s, ic2_sq)
              - 2.0 * _dot_nt(_dot(intra_c1, s_hat), intra_c2))
    gw_loss = _sum_all(gw_mat * s_hat)
    loss = w_loss + gw_weight * gw_loss + 20.0                # (1, 1)

    # ---- outputs: transport plan + packed (loss, lambda) stats slab ----
    s_ref[...] = s
    lane = lax.broadcasted_iota(jnp.int32, (1, stats_ref.shape[-1]), 1)
    stats_ref[...] = (jnp.where(lane == 0, loss, 0.0)
                      + jnp.where(lane == 1, lam_new, 0.0))


def _round_up(x, m):
    return ((x + m - 1) // m) * m


def fused_gw_loss_batched(out1, out2, adj1, adj2, threshold_lambda,
                          gw_weight=20.0, gamma_p=0.01, in_iter=5, out_iter=10):
    """Batched FusedGWLoss.forward: one grid step ("parallel") per graph pair.

    Note (review #6): use B >= 2 graph pairs per call so the parallel grid axis
    has >= 2 steps and both TensorCores are used on v7x.
    """
    assert in_iter >= 1 and out_iter >= 1
    B, n1, d = out1.shape
    _, n2, _ = out2.shape
    # Lane-dense padding: last dim of the (n1, n2) work -> multiple of 128,
    # sublane dim -> multiple of 8.  Padding is masked inside the kernel.
    N1 = _round_up(max(n1, 8), 8)
    N2 = _round_up(max(n2, 128), 128)
    f32 = jnp.float32

    def pad(x, r, c, dtype):
        return jnp.pad(x.astype(dtype),
                       ((0, 0), (0, r - x.shape[1]), (0, c - x.shape[2])))

    out1_p = pad(out1, N1, d, f32)
    out2_p = pad(out2, N2, d, f32)
    # Adjacency is exactly 0/1 -> lossless in bf16; halves DMA + resident VMEM.
    adj1_p = pad(adj1, N1, N1, jnp.bfloat16)
    adj2_p = pad(adj2, N2, N2, jnp.bfloat16)
    lam = jnp.broadcast_to(
        jnp.asarray(threshold_lambda, f32).reshape(-1, 1, 1), (B, 1, 1))

    kernel = functools.partial(
        _fused_gw_kernel, n1=int(n1), n2=int(n2),
        gw_weight=float(gw_weight), gamma_p=float(gamma_p),
        in_iter=int(in_iter), out_iter=int(out_iter))

    s, stats = pl.pallas_call(
        kernel,
        grid=(B,),
        out_shape=(
            jax.ShapeDtypeStruct((B, N1, N2), f32),    # transport plan (padded)
            jax.ShapeDtypeStruct((B, 1, 128), f32),    # lane 0: loss, 1: lambda
        ),
        in_specs=[
            pl.BlockSpec((None, 1, 1), lambda b: (b, 0, 0)),
            pl.BlockSpec((None, N1, d), lambda b: (b, 0, 0)),
            pl.BlockSpec((None, N2, d), lambda b: (b, 0, 0)),
            pl.BlockSpec((None, N1, N1), lambda b: (b, 0, 0)),
            pl.BlockSpec((None, N2, N2), lambda b: (b, 0, 0)),
        ],
        out_specs=(
            pl.BlockSpec((None, N1, N2), lambda b: (b, 0, 0)),
            pl.BlockSpec((None, 1, 128), lambda b: (b, 0, 0)),
        ),
        compiler_params=pltpu.CompilerParams(
            # Pairs are independent -> shard across TensorCores on v7x.
            dimension_semantics=("parallel",),
            # Explicit scoped-VMEM budget (v5e default is only 16 MiB).
            vmem_limit_bytes=32 * 1024 * 1024),
    )(lam, out1_p, out2_p, adj1_p, adj2_p)

    loss = stats[:, 0, 0]
    lam_new = stats[:, 0, 1]
    return loss, s[:, :n1, :n2], lam_new


def fused_gw_loss(out1, out2, adj1, adj2, threshold_lambda,
                  gw_weight=20.0, gamma_p=0.01, in_iter=5, out_iter=10):
    """Single-pair equivalent of FusedGWLoss.forward(out1, out2)."""
    loss, s, lam_new = fused_gw_loss_batched(
        out1[None], out2[None], adj1[None], adj2[None], threshold_lambda,
        gw_weight=gw_weight, gamma_p=gamma_p,
        in_iter=in_iter, out_iter=out_iter)
    return loss[0], s[0], lam_new[0]


def _reference_single(out1, out2, adj1, adj2, threshold_lambda,
                      gw_weight=20.0, gamma_p=0.01, in_iter=5, out_iter=10):
    """Pure-JAX float32 port of the PyTorch FusedGWLoss.forward (one pair)."""
    hi = lax.Precision.HIGHEST
    f32 = jnp.float32
    dot = functools.partial(jnp.dot, precision=hi)
    out1 = out1.astype(f32)
    out2 = out2.astype(f32)
    adj1 = adj1.astype(f32)
    adj2 = adj2.astype(f32)

    inter_c = jnp.exp(-dot(out1, out2.T))
    intra_c1 = jnp.exp(-dot(out1, out1.T)) * adj1
    intra_c2 = jnp.exp(-dot(out2, out2.T)) * adj2
    n1, n2 = inter_c.shape
    ic1_sq, ic2_sq = intra_c1 ** 2, intra_c2 ** 2

    a = jnp.full((n1, 1), 1.0 / n1, f32)
    b = jnp.full((1, n2), 1.0 / n2, f32)
    f = jnp.full((n1, 1), 1.0 / n1, f32)
    g = jnp.full((1, n2), 1.0 / n2, f32)
    s = jnp.full((n1, n2), 1.0 / (n1 * n2), f32)

    def soft_min_row(z, eps):
        hm = jnp.min(z, axis=1, keepdims=True)
        return hm - eps * jnp.log(
            jnp.sum(jnp.exp(-(z - hm) / eps), axis=1, keepdims=True))

    def soft_min_col(z, eps):
        hm = jnp.min(z, axis=0, keepdims=True)
        return hm - eps * jnp.log(
            jnp.sum(jnp.exp(-(z - hm) / eps), axis=0, keepdims=True))

    for _ in range(out_iter):
        s_shift = s - threshold_lambda
        a_hat = jnp.sum(s_shift, axis=1, keepdims=True)
        b_hat = jnp.sum(s_shift, axis=0, keepdims=True)
        temp = dot(ic1_sq, a_hat) + dot(b_hat, ic2_sq)
        L = temp - 2.0 * dot(dot(intra_c1, s_shift), intra_c2.T)
        Q = inter_c + gw_weight * L
        for _ in range(in_iter):
            f = soft_min_row(Q - g, gamma_p) + gamma_p * jnp.log(a)
            g = soft_min_col(Q - f, gamma_p) + gamma_p * jnp.log(b)
        s = 0.05 * s + 0.95 * jnp.exp((f + g - Q) / gamma_p)

    one_mat = jnp.ones((n1, n2), f32)
    k1 = jnp.sum(inter_c)
    mid = (dot(ic1_sq, one_mat) * n2 + dot(one_mat, ic2_sq) * n1
           - 2.0 * dot(dot(intra_c1, one_mat), intra_c2.T))
    k2 = jnp.sum(mid * s)
    k3 = jnp.sum(mid)
    lam_new = (0.05 * (k1 + 2.0 * gw_weight * k2) / (2.0 * gw_weight * k3)
               + 0.95 * threshold_lambda)
    s_hat = s - lam_new
    w_loss = jnp.sum(inter_c * s_hat)
    a_s = jnp.sum(s_hat, axis=1, keepdims=True)
    b_s = jnp.sum(s_hat, axis=0, keepdims=True)
    gw_mat = (dot(ic1_sq, a_s) + dot(b_s, ic2_sq)
              - 2.0 * dot(dot(intra_c1, s_hat), intra_c2.T))
    gw_loss = jnp.sum(gw_mat * s_hat)
    loss = w_loss + gw_weight * gw_loss + 20.0
    return loss, s, lam_new


if __name__ == "__main__":
    import numpy as np

    # Two graph pairs with 16 nodes each, hidden=32 (deterministic inputs).
    B, n1, n2, d = 2, 16, 16, 32
    key = jax.random.PRNGKey(0)
    key1, key2, key3, key4 = jax.random.split(key, 4)

    out1 = 0.1 * jax.random.normal(key1, (B, n1, d), dtype=jnp.float32)
    out2 = 0.1 * jax.random.normal(key2, (B, n2, d), dtype=jnp.float32)

    a1 = (jax.random.uniform(key3, (B, n1, n1)) < 0.5).astype(jnp.float32)
    adj1 = jnp.clip(a1 + jnp.swapaxes(a1, -1, -2)
                    + jnp.eye(n1, dtype=jnp.float32), 0.0, 1.0)
    a2 = (jax.random.uniform(key4, (B, n2, n2)) < 0.5).astype(jnp.float32)
    adj2 = jnp.clip(a2 + jnp.swapaxes(a2, -1, -2)
                    + jnp.eye(n2, dtype=jnp.float32), 0.0, 1.0)

    init_threshold_lambda = 1.0 / (n1 * n2)

    loss, s, lam_new = fused_gw_loss_batched(
        out1, out2, adj1, adj2, init_threshold_lambda,
        gw_weight=20.0, gamma_p=0.01, in_iter=5, out_iter=10)
    jax.block_until_ready((loss, s, lam_new))

    # Validate each pair against the pure-JAX float32 reference.
    for i in range(B):
        l_ref, s_ref, lam_ref = _reference_single(
            out1[i], out2[i], adj1[i], adj2[i], init_threshold_lambda)
        assert np.isfinite(float(loss[i]))
        assert (abs(float(loss[i]) - float(l_ref))
                <= 0.1 * max(1.0, abs(float(l_ref))))
        assert float(jnp.max(jnp.abs(s[i] - s_ref))) <= 1e-2
        assert (abs(float(lam_new[i]) - float(lam_ref))
                <= 1e-3 + 0.1 * abs(float(lam_ref)))

    print("KERNEL_OK")
</pallas_src>

<mosaic_0001>
module attributes {stable_mosaic.version = 11 : i64} {
  func.func @_fused_gw_kernel(%arg0: i32, %arg1: memref<1x1x1xf32, #tpu.memory_space<vmem>>, %arg2: memref<1x16x32xf32, #tpu.memory_space<vmem>>, %arg3: memref<1x128x32xf32, #tpu.memory_space<vmem>>, %arg4: memref<1x16x16xbf16, #tpu.memory_space<vmem>>, %arg5: memref<1x128x128xbf16, #tpu.memory_space<vmem>>, %arg6: memref<1x16x128xf32, #tpu.memory_space<vmem>>, %arg7: memref<1x1x128xf32, #tpu.memory_space<vmem>>) attributes {dimension_semantics = [#tpu.dimension_semantics<parallel>], iteration_bounds = array<i64: 2>, scalar_prefetch = 0 : i64, scratch_operands = 0 : i64, tpu.core_type = #tpu.core_type<tc>, window_params = [{transform_indices = @transform_0, window_bounds = array<i64: 1, 1, 1>}, {transform_indices = @transform_1, window_bounds = array<i64: 1, 16, 32>}, {transform_indices = @transform_2, window_bounds = array<i64: 1, 128, 32>}, {transform_indices = @transform_3, window_bounds = array<i64: 1, 16, 16>}, {transform_indices = @transform_4, window_bounds = array<i64: 1, 128, 128>}, {transform_indices = @transform_5, window_bounds = array<i64: 1, 16, 128>}, {transform_indices = @transform_6, window_bounds = array<i64: 1, 1, 128>}]} {
    %c0 = arith.constant 0 : index
    %c0_0 = arith.constant 0 : index
    %c0_1 = arith.constant 0 : index
    %0 = vector.load %arg2[%c0, %c0_0, %c0_1] : memref<1x16x32xf32, #tpu.memory_space<vmem>>, vector<1x16x32xf32>
    %1 = vector.shape_cast %0 : vector<1x16x32xf32> to vector<16x32xf32>
    %c0_2 = arith.constant 0 : index
    %c0_3 = arith.constant 0 : index
    %c0_4 = arith.constant 0 : index
    %2 = vector.load %arg3[%c0_2, %c0_3, %c0_4] : memref<1x128x32xf32, #tpu.memory_space<vmem>>, vector<1x128x32xf32>
    %3 = vector.shape_cast %2 : vector<1x128x32xf32> to vector<128x32xf32>
    %c0_5 = arith.constant 0 : index
    %c0_6 = arith.constant 0 : index
    %c0_7 = arith.constant 0 : index
    %4 = vector.load %arg4[%c0_5, %c0_6, %c0_7] : memref<1x16x16xbf16, #tpu.memory_space<vmem>>, vector<1x16x16xbf16>
    %5 = vector.shape_cast %4 : vector<1x16x16xbf16> to vector<16x16xbf16>
    %6 = arith.extf %5 : vector<16x16xbf16> to vector<16x16xf32>
    %c0_8 = arith.constant 0 : index
    %c0_9 = arith.constant 0 : index
    %c0_10 = arith.constant 0 : index
    %7 = vector.load %arg5[%c0_8, %c0_9, %c0_10] : memref<1x128x128xbf16, #tpu.memory_space<vmem>>, vector<1x128x128xbf16>
    %8 = vector.shape_cast %7 : vector<1x128x128xbf16> to vector<128x128xbf16>
    %9 = arith.extf %8 : vector<128x128xbf16> to vector<128x128xf32>
    %c0_11 = arith.constant 0 : index
    %c0_12 = arith.constant 0 : index
    %c0_13 = arith.constant 0 : index
    %10 = vector.load %arg1[%c0_11, %c0_12, %c0_13] : memref<1x1x1xf32, #tpu.memory_space<vmem>>, vector<1x1x1xf32>
    %11 = vector.shape_cast %10 : vector<1x1x1xf32> to vector<1x1xf32>
    %12 = tpu.iota {dimensions = array<i32: 0>} : vector<16x128xi32>
    %c16_i32 = arith.constant 16 : i32
    %13 = vector.broadcast %c16_i32 : i32 to vector<16x128xi32>
    %14 = arith.cmpi slt, %12, %13 : vector<16x128xi32>
    %15 = tpu.iota {dimensions = array<i32: 1>} : vector<16x128xi32>
    %c16_i32_14 = arith.constant 16 : i32
    %16 = vector.broadcast %c16_i32_14 : i32 to vector<16x128xi32>
    %17 = arith.cmpi slt, %15, %16 : vector<16x128xi32>
    %18 = arith.andi %14, %17 : vector<16x128xi1>
    %19 = tpu.iota {dimensions = array<i32: 1>} : vector<1x128xi32>
    %c16_i32_15 = arith.constant 16 : i32
    %20 = vector.broadcast %c16_i32_15 : i32 to vector<1x128xi32>
    %21 = arith.cmpi slt, %19, %20 : vector<1x128xi32>
    %cst = arith.constant 6.250000e-02 : f32
    %cst_16 = arith.constant 0.000000e+00 : f32
    %22 = vector.broadcast %cst : f32 to vector<1x128xf32>
    %23 = vector.broadcast %cst_16 : f32 to vector<1x128xf32>
    %24 = arith.select %21, %22, %23 : vector<1x128xi1>, vector<1x128xf32>
    %cst_17 = arith.constant dense<0.000000e+00> : vector<16x128xf32>
    %25 = tpu.matmul %1, %3, %cst_17 {dimension_numbers = #tpu.dot_dimension_numbers<[1], [1], [0], [0], [0, 0, 1, 0], [], []>} : vector<16x32xf32>, vector<128x32xf32>, vector<16x128xf32> -> vector<16x128xf32>
    %cst_18 = arith.constant 0.000000e+00 : f32
    %26 = vector.broadcast %cst_18 : f32 to vector<16x128xf32>
    %27 = arith.subf %26, %25 : vector<16x128xf32>
    %28 = math.exp %27 : vector<16x128xf32>
    %cst_19 = arith.constant 0.000000e+00 : f32
    %29 = vector.broadcast %cst_19 : f32 to vector<16x128xf32>
    %30 = arith.select %18, %28, %29 : vector<16x128xi1>, vector<16x128xf32>
    %cst_20 = arith.constant dense<0.000000e+00> : vector<16x16xf32>
    %31 = tpu.matmul %1, %1, %cst_20 {dimension_numbers = #tpu.dot_dimension_numbers<[1], [1], [0], [0], [0, 0, 1, 0], [], []>} : vector<16x32xf32>, vector<16x32xf32>, vector<16x16xf32> -> vector<16x16xf32>
    %cst_21 = arith.constant 0.000000e+00 : f32
    %32 = vector.broadcast %cst_21 : f32 to vector<16x16xf32>
    %33 = arith.subf %32, %31 : vector<16x16xf32>
    %34 = math.exp %33 : vector<16x16xf32>
    %35 = arith.mulf %34, %6 : vector<16x16xf32>
    %cst_22 = arith.constant dense<0.000000e+00> : vector<128x128xf32>
    %36 = tpu.matmul %3, %3, %cst_22 {dimension_numbers = #tpu.dot_dimension_numbers<[1], [1], [0], [0], [0, 0, 1, 0], [], []>} : vector<128x32xf32>, vector<128x32xf32>, vector<128x128xf32> -> vector<128x128xf32>
    %cst_23 = arith.constant 0.000000e+00 : f32
    %37 = vector.broadcast %cst_23 : f32 to vector<128x128xf32>
    %38 = arith.subf %37, %36 : vector<128x128xf32>
    %39 = math.exp %38 : vector<128x128xf32>
    %40 = arith.mulf %39, %9 : vector<128x128xf32>
    %41 = arith.mulf %35, %35 : vector<16x16xf32>
    %42 = arith.mulf %40, %40 : vector<128x128xf32>
    %cst_24 = arith.constant 3.906250e-03 : f32
    %cst_25 = arith.constant 0.000000e+00 : f32
    %43 = vector.broadcast %cst_24 : f32 to vector<16x128xf32>
    %44 = vector.broadcast %cst_25 : f32 to vector<16x128xf32>
    %45 = arith.select %18, %43, %44 : vector<16x128xi1>, vector<16x128xf32>
    %cst_26 = arith.constant 6.250000e-02 : f32
    %46 = vector.broadcast %cst_26 : f32 to vector<1x128xf32>
    %c0_i32 = arith.constant 0 : i32
    %c10_i32 = arith.constant 10 : i32
    %47 = arith.addi %c0_i32, %c10_i32 : i32
    %c1_i32 = arith.constant 1 : i32
    %48:2 = scf.for %arg8 = %c0_i32 to %47 step %c1_i32 iter_args(%arg9 = %45, %arg10 = %46) -> (vector<16x128xf32>, vector<1x128xf32>)  : i32 {
      %cst_84 = arith.constant dense<0.000000e+00> : vector<16xf32>
      %178 = vector.multi_reduction <add>, %arg9, %cst_84 [1] : vector<16x128xf32> to vector<16xf32>
      %179 = vector.shape_cast %178 : vector<16xf32> to vector<16x1xf32>
      %cst_85 = arith.constant 1.600000e+01 : f32
      %180 = vector.broadcast %cst_85 : f32 to vector<1x1xf32>
      %181 = arith.mulf %180, %11 : vector<1x1xf32>
      %182 = vector.broadcast %181 : vector<1x1xf32> to vector<16x1xf32>
      %183 = arith.subf %179, %182 : vector<16x1xf32>
      %cst_86 = arith.constant dense<0.000000e+00> : vector<128xf32>
      %184 = vector.multi_reduction <add>, %arg9, %cst_86 [0] : vector<16x128xf32> to vector<128xf32>
      %185 = vector.shape_cast %184 : vector<128xf32> to vector<1x128xf32>
      %cst_87 = arith.constant 1.600000e+01 : f32
      %186 = vector.broadcast %cst_87 : f32 to vector<1x1xf32>
      %187 = arith.mulf %186, %11 : vector<1x1xf32>
      %188 = vector.broadcast %187 : vector<1x1xf32> to vector<1x128xf32>
      %189 = arith.subf %185, %188 : vector<1x128xf32>
      %190 = vector.broadcast %11 : vector<1x1xf32> to vector<16x128xf32>
      %191 = arith.subf %arg9, %190 : vector<16x128xf32>
      %cst_88 = arith.constant dense<0.000000e+00> : vector<16x1xf32>
      %192 = tpu.matmul %41, %183, %cst_88 {dimension_numbers = #tpu.dot_dimension_numbers<[1], [0], [0], [1], [0, 0, 1, 1], [], []>} : vector<16x16xf32>, vector<16x1xf32>, vector<16x1xf32> -> vector<16x1xf32>
      %cst_89 = arith.constant dense<0.000000e+00> : vector<1x128xf32>
      %193 = tpu.matmul %189, %42, %cst_89 {dimension_numbers = #tpu.dot_dimension_numbers<[1], [0], [0], [1], [0, 0, 1, 1], [], []>} : vector<1x128xf32>, vector<128x128xf32>, vector<1x128xf32> -> vector<1x128xf32>
      %194 = vector.broadcast %192 : vector<16x1xf32> to vector<16x128xf32>
      %195 = vector.broadcast %193 : vector<1x128xf32> to vector<16x128xf32>
      %196 = arith.addf %194, %195 : vector<16x128xf32>
      %cst_90 = arith.constant dense<0.000000e+00> : vector<16x128xf32>
      %197 = tpu.matmul %35, %191, %cst_90 {dimension_numbers = #tpu.dot_dimension_numbers<[1], [0], [0], [1], [0, 0, 1, 1], [], []>} : vector<16x16xf32>, vector<16x128xf32>, vector<16x128xf32> -> vector<16x128xf32>
      %cst_91 = arith.constant dense<0.000000e+00> : vector<16x128xf32>
      %198 = tpu.matmul %197, %40, %cst_91 {dimension_numbers = #tpu.dot_dimension_numbers<[1], [1], [0], [0], [0, 0, 1, 0], [], []>} : vector<16x128xf32>, vector<128x128xf32>, vector<16x128xf32> -> vector<16x128xf32>
      %cst_92 = arith.constant 2.000000e+00 : f32
      %199 = vector.broadcast %cst_92 : f32 to vector<16x128xf32>
      %200 = arith.mulf %199, %198 : vector<16x128xf32>
      %201 = arith.subf %196, %200 : vector<16x128xf32>
      %cst_93 = arith.constant 2.000000e+01 : f32
      %202 = vector.broadcast %cst_93 : f32 to vector<16x128xf32>
      %203 = arith.mulf %202, %201 : vector<16x128xf32>
      %204 = arith.addf %30, %203 : vector<16x128xf32>
      %cst_94 = arith.constant 1.000000e+30 : f32
      %205 = vector.broadcast %cst_94 : f32 to vector<16x128xf32>
      %206 = arith.select %17, %204, %205 : vector<16x128xi1>, vector<16x128xf32>
      %cst_95 = arith.constant 1.000000e+30 : f32
      %207 = vector.broadcast %cst_95 : f32 to vector<16x128xf32>
      %208 = arith.select %14, %204, %207 : vector<16x128xi1>, vector<16x128xf32>
      %209 = vector.broadcast %arg10 : vector<1x128xf32> to vector<16x128xf32>
      %210 = arith.subf %206, %209 : vector<16x128xf32>
      %cst_96 = arith.constant dense<0x7F800000> : vector<16xf32>
      %211 = vector.multi_reduction <minimumf>, %210, %cst_96 [1] : vector<16x128xf32> to vector<16xf32>
      %212 = vector.shape_cast %211 : vector<16xf32> to vector<16x1xf32>
      %213 = vector.broadcast %212 : vector<16x1xf32> to vector<16x128xf32>
      %214 = arith.subf %213, %210 : vector<16x128xf32>
      %cst_97 = arith.constant 1.000000e+02 : f32
      %215 = vector.broadcast %cst_97 : f32 to vector<16x128xf32>
      %216 = arith.mulf %214, %215 : vector<16x128xf32>
      %217 = math.exp %216 : vector<16x128xf32>
      %cst_98 = arith.constant dense<0.000000e+00> : vector<16xf32>
      %218 = vector.multi_reduction <add>, %217, %cst_98 [1] : vector<16x128xf32> to vector<16xf32>
      %219 = vector.shape_cast %218 : vector<16xf32> to vector<16x1xf32>
      %220 = math.log %219 : vector<16x1xf32>
      %cst_99 = arith.constant 0.00999999977 : f32
      %221 = vector.broadcast %cst_99 : f32 to vector<16x1xf32>
      %222 = arith.mulf %221, %220 : vector<16x1xf32>
      %223 = arith.subf %212, %222 : vector<16x1xf32>
      %cst_100 = arith.constant -0.0277258866 : f32
      %224 = vector.broadcast %cst_100 : f32 to vector<16x1xf32>
      %225 = arith.addf %223, %224 : vector<16x1xf32>
      %226 = vector.broadcast %225 : vector<16x1xf32> to vector<16x128xf32>
      %227 = arith.subf %208, %226 : vector<16x128xf32>
      %cst_101 = arith.constant dense<0x7F800000> : vector<128xf32>
      %228 = vector.multi_reduction <minimumf>, %227, %cst_101 [0] : vector<16x128xf32> to vector<128xf32>
      %229 = vector.shape_cast %228 : vector<128xf32> to vector<1x128xf32>
      %230 = vector.broadcast %229 : vector<1x128xf32> to vector<16x128xf32>
      %231 = arith.subf %230, %227 : vector<16x128xf32>
      %cst_102 = arith.constant 1.000000e+02 : f32
      %232 = vector.broadcast %cst_102 : f32 to vector<16x128xf32>
      %233 = arith.mulf %231, %232 : vector<16x128xf32>
      %234 = math.exp %233 : vector<16x128xf32>
      %cst_103 = arith.constant dense<0.000000e+00> : vector<128xf32>
      %235 = vector.multi_reduction <add>, %234, %cst_103 [0] : vector<16x128xf32> to vector<128xf32>
      %236 = vector.shape_cast %235 : vector<128xf32> to vector<1x128xf32>
      %237 = math.log %236 : vector<1x128xf32>
      %cst_104 = arith.constant 0.00999999977 : f32
      %238 = vector.broadcast %cst_104 : f32 to vector<1x128xf32>
      %239 = arith.mulf %238, %237 : vector<1x128xf32>
      %240 = arith.subf %229, %239 : vector<1x128xf32>
      %cst_105 = arith.constant -0.0277258866 : f32
      %241 = vector.broadcast %cst_105 : f32 to vector<1x128xf32>
      %242 = arith.addf %240, %241 : vector<1x128xf32>
      %243 = vector.broadcast %242 : vector<1x128xf32> to vector<16x128xf32>
      %244 = arith.subf %206, %243 : vector<16x128xf32>
      %cst_106 = arith.constant dense<0x7F800000> : vector<16xf32>
      %245 = vector.multi_reduction <minimumf>, %244, %cst_106 [1] : vector<16x128xf32> to vector<16xf32>
      %246 = vector.shape_cast %245 : vector<16xf32> to vector<16x1xf32>
      %247 = vector.broadcast %246 : vector<16x1xf32> to vector<16x128xf32>
      %248 = arith.subf %247, %244 : vector<16x128xf32>
      %cst_107 = arith.constant 1.000000e+02 : f32
      %249 = vector.broadcast %cst_107 : f32 to vector<16x128xf32>
      %250 = arith.mulf %248, %249 : vector<16x128xf32>
      %251 = math.exp %250 : vector<16x128xf32>
      %cst_108 = arith.constant dense<0.000000e+00> : vector<16xf32>
      %252 = vector.multi_reduction <add>, %251, %cst_108 [1] : vector<16x128xf32> to vector<16xf32>
      %253 = vector.shape_cast %252 : vector<16xf32> to vector<16x1xf32>
      %254 = math.log %253 : vector<16x1xf32>
      %cst_109 = arith.constant 0.00999999977 : f32
      %255 = vector.broadcast %cst_109 : f32 to vector<16x1xf32>
      %256 = arith.mulf %255, %254 : vector<16x1xf32>
      %257 = arith.subf %246, %256 : vector<16x1xf32>
      %cst_110 = arith.constant -0.0277258866 : f32
      %258 = vector.broadcast %cst_110 : f32 to vector<16x1xf32>
      %259 = arith.addf %257, %258 : vector<16x1xf32>
      %260 = vector.broadcast %259 : vector<16x1xf32> to vector<16x128xf32>
      %261 = arith.subf %208, %260 : vector<16x128xf32>
      %cst_111 = arith.constant dense<0x7F800000> : vector<128xf32>
      %262 = vector.multi_reduction <minimumf>, %261, %cst_111 [0] : vector<16x128xf32> to vector<128xf32>
      %263 = vector.shape_cast %262 : vector<128xf32> to vector<1x128xf32>
      %264 = vector.broadcast %263 : vector<1x128xf32> to vector<16x128xf32>
      %265 = arith.subf %264, %261 : vector<16x128xf32>
      %cst_112 = arith.constant 1.000000e+02 : f32
      %266 = vector.broadcast %cst_112 : f32 to vector<16x128xf32>
      %267 = arith.mulf %265, %266 : vector<16x128xf32>
      %268 = math.exp %267 : vector<16x128xf32>
      %cst_113 = arith.constant dense<0.000000e+00> : vector<128xf32>
      %269 = vector.multi_reduction <add>, %268, %cst_113 [0] : vector<16x128xf32> to vector<128xf32>
      %270 = vector.shape_cast %269 : vector<128xf32> to vector<1x128xf32>
      %271 = math.log %270 : vector<1x128xf32>
      %cst_114 = arith.constant 0.00999999977 : f32
      %272 = vector.broadcast %cst_114 : f32 to vector<1x128xf32>
      %273 = arith.mulf %272, %271 : vector<1x128xf32>
      %274 = arith.subf %263, %273 : vector<1x128xf32>
      %cst_115 = arith.constant -0.0277258866 : f32
      %275 = vector.broadcast %cst_115 : f32 to vector<1x128xf32>
      %276 = arith.addf %274, %275 : vector<1x128xf32>
      %277 = vector.broadcast %276 : vector<1x128xf32> to vector<16x128xf32>
      %278 = arith.subf %206, %277 : vector<16x128xf32>
      %cst_116 = arith.constant dense<0x7F800000> : vector<16xf32>
      %279 = vector.multi_reduction <minimumf>, %278, %cst_116 [1] : vector<16x128xf32> to vector<16xf32>
      %280 = vector.shape_cast %279 : vector<16xf32> to vector<16x1xf32>
      %281 = vector.broadcast %280 : vector<16x1xf32> to vector<16x128xf32>
      %282 = arith.subf %281, %278 : vector<16x128xf32>
      %cst_117 = arith.constant 1.000000e+02 : f32
      %283 = vector.broadcast %cst_117 : f32 to vector<16x128xf32>
      %284 = arith.mulf %282, %283 : vector<16x128xf32>
      %285 = math.exp %284 : vector<16x128xf32>
      %cst_118 = arith.constant dense<0.000000e+00> : vector<16xf32>
      %286 = vector.multi_reduction <add>, %285, %cst_118 [1] : vector<16x128xf32> to vector<16xf32>
      %287 = vector.shape_cast %286 : vector<16xf32> to vector<16x1xf32>
      %288 = math.log %287 : vector<16x1xf32>
      %cst_119 = arith.constant 0.00999999977 : f32
      %289 = vector.broadcast %cst_119 : f32 to vector<16x1xf32>
      %290 = arith.mulf %289, %288 : vector<16x1xf32>
      %291 = arith.subf %280, %290 : vector<16x1xf32>
      %cst_120 = arith.constant -0.0277258866 : f32
      %292 = vector.broadcast %cst_120 : f32 to vector<16x1xf32>
      %293 = arith.addf %291, %292 : vector<16x1xf32>
      %294 = vector.broadcast %293 : vector<16x1xf32> to vector<16x128xf32>
      %295 = arith.subf %208, %294 : vector<16x128xf32>
      %cst_121 = arith.constant dense<0x7F800000> : vector<128xf32>
      %296 = vector.multi_reduction <minimumf>, %295, %cst_121 [0] : vector<16x128xf32> to vector<128xf32>
      %297 = vector.shape_cast %296 : vector<128xf32> to vector<1x128xf32>
      %298 = vector.broadcast %297 : vector<1x128xf32> to vector<16x128xf32>
      %299 = arith.subf %298, %295 : vector<16x128xf32>
      %cst_122 = arith.constant 1.000000e+02 : f32
      %300 = vector.broadcast %cst_122 : f32 to vector<16x128xf32>
      %301 = arith.mulf %299, %300 : vector<16x128xf32>
      %302 = math.exp %301 : vector<16x128xf32>
      %cst_123 = arith.constant dense<0.000000e+00> : vector<128xf32>
      %303 = vector.multi_reduction <add>, %302, %cst_123 [0] : vector<16x128xf32> to vector<128xf32>
      %304 = vector.shape_cast %303 : vector<128xf32> to vector<1x128xf32>
      %305 = math.log %304 : vector<1x128xf32>
      %cst_124 = arith.constant 0.00999999977 : f32
      %306 = vector.broadcast %cst_124 : f32 to vector<1x128xf32>
      %307 = arith.mulf %306, %305 : vector<1x128xf32>
      %308 = arith.subf %297, %307 : vector<1x128xf32>
      %cst_125 = arith.constant -0.0277258866 : f32
      %309 = vector.broadcast %cst_125 : f32 to vector<1x128xf32>
      %310 = arith.addf %308, %309 : vector<1x128xf32>
      %311 = vector.broadcast %310 : vector<1x128xf32> to vector<16x128xf32>
      %312 = arith.subf %206, %311 : vector<16x128xf32>
      %cst_126 = arith.constant dense<0x7F800000> : vector<16xf32>
      %313 = vector.multi_reduction <minimumf>, %312, %cst_126 [1] : vector<16x128xf32> to vector<16xf32>
      %314 = vector.shape_cast %313 : vector<16xf32> to vector<16x1xf32>
      %315 = vector.broadcast %314 : vector<16x1xf32> to vector<16x128xf32>
      %316 = arith.subf %315, %312 : vector<16x128xf32>
      %cst_127 = arith.constant 1.000000e+02 : f32
      %317 = vector.broadcast %cst_127 : f32 to vector<16x128xf32>
      %318 = arith.mulf %316, %317 : vector<16x128xf32>
      %319 = math.exp %318 : vector<16x128xf32>
      %cst_128 = arith.constant dense<0.000000e+00> : vector<16xf32>
      %320 = vector.multi_reduction <add>, %319, %cst_128 [1] : vector<16x128xf32> to vector<16xf32>
      %321 = vector.shape_cast %320 : vector<16xf32> to vector<16x1xf32>
      %322 = math.log %321 : vector<16x1xf32>
      %cst_129 = arith.constant 0.00999999977 : f32
      %323 = vector.broadcast %cst_129 : f32 to vector<16x1xf32>
      %324 = arith.mulf %323, %322 : vector<16x1xf32>
      %325 = arith.subf %314, %324 : vector<16x1xf32>
      %cst_130 = arith.constant -0.0277258866 : f32
      %326 = vector.broadcast %cst_130 : f32 to vector<16x1xf32>
      %327 = arith.addf %325, %326 : vector<16x1xf32>
      %328 = vector.broadcast %327 : vector<16x1xf32> to vector<16x128xf32>
      %329 = arith.subf %208, %328 : vector<16x128xf32>
      %cst_131 = arith.constant dense<0x7F800000> : vector<128xf32>
      %330 = vector.multi_reduction <minimumf>, %329, %cst_131 [0] : vector<16x128xf32> to vector<128xf32>
      %331 = vector.shape_cast %330 : vector<128xf32> to vector<1x128xf32>
      %332 = vector.broadcast %331 : vector<1x128xf32> to vector<16x128xf32>
      %333 = arith.subf %332, %329 : vector<16x128xf32>
      %cst_132 = arith.constant 1.000000e+02 : f32
      %334 = vector.broadcast %cst_132 : f32 to vector<16x128xf32>
      %335 = arith.mulf %333, %334 : vector<16x128xf32>
      %336 = math.exp %335 : vector<16x128xf32>
      %cst_133 = arith.constant dense<0.000000e+00> : vector<128xf32>
      %337 = vector.multi_reduction <add>, %336, %cst_133 [0] : vector<16x128xf32> to vector<128xf32>
      %338 = vector.shape_cast %337 : vector<128xf32> to vector<1x128xf32>
      %339 = math.log %338 : vector<1x128xf32>
      %cst_134 = arith.constant 0.00999999977 : f32
      %340 = vector.broadcast %cst_134 : f32 to vector<1x128xf32>
      %341 = arith.mulf %340, %339 : vector<1x128xf32>
      %342 = arith.subf %331, %341 : vector<1x128xf32>
      %cst_135 = arith.constant -0.0277258866 : f32
      %343 = vector.broadcast %cst_135 : f32 to vector<1x128xf32>
      %344 = arith.addf %342, %343 : vector<1x128xf32>
      %345 = vector.broadcast %344 : vector<1x128xf32> to vector<16x128xf32>
      %346 = arith.subf %206, %345 : vector<16x128xf32>
      %cst_136 = arith.constant dense<0x7F800000> : vector<16xf32>
      %347 = vector.multi_reduction <minimumf>, %346, %cst_136 [1] : vector<16x128xf32> to vector<16xf32>
      %348 = vector.shape_cast %347 : vector<16xf32> to vector<16x1xf32>
      %349 = vector.broadcast %348 : vector<16x1xf32> to vector<16x128xf32>
      %350 = arith.subf %349, %346 : vector<16x128xf32>
      %cst_137 = arith.constant 1.000000e+02 : f32
      %351 = vector.broadcast %cst_137 : f32 to vector<16x128xf32>
      %352 = arith.mulf %350, %351 : vector<16x128xf32>
      %353 = math.exp %352 : vector<16x128xf32>
      %cst_138 = arith.constant dense<0.000000e+00> : vector<16xf32>
      %354 = vector.multi_reduction <add>, %353, %cst_138 [1] : vector<16x128xf32> to vector<16xf32>
      %355 = vector.shape_cast %354 : vector<16xf32> to vector<16x1xf32>
      %356 = math.log %355 : vector<16x1xf32>
      %cst_139 = arith.constant 0.00999999977 : f32
      %357 = vector.broadcast %cst_139 : f32 to vector<16x1xf32>
      %358 = arith.mulf %357, %356 : vector<16x1xf32>
      %359 = arith.subf %348, %358 : vector<16x1xf32>
      %cst_140 = arith.constant -0.0277258866 : f32
      %360 = vector.broadcast %cst_140 : f32 to vector<16x1xf32>
      %361 = arith.addf %359, %360 : vector<16x1xf32>
      %362 = vector.broadcast %361 : vector<16x1xf32> to vector<16x128xf32>
      %363 = arith.subf %208, %362 : vector<16x128xf32>
      %cst_141 = arith.constant dense<0x7F800000> : vector<128xf32>
      %364 = vector.multi_reduction <minimumf>, %363, %cst_141 [0] : vector<16x128xf32> to vector<128xf32>
      %365 = vector.shape_cast %364 : vector<128xf32> to vector<1x128xf32>
      %366 = vector.broadcast %365 : vector<1x128xf32> to vector<16x128xf32>
      %367 = arith.subf %366, %363 : vector<16x128xf32>
      %cst_142 = arith.constant 1.000000e+02 : f32
      %368 = vector.broadcast %cst_142 : f32 to vector<16x128xf32>
      %369 = arith.mulf %367, %368 : vector<16x128xf32>
      %370 = math.exp %369 : vector<16x128xf32>
      %cst_143 = arith.constant dense<0.000000e+00> : vector<128xf32>
      %371 = vector.multi_reduction <add>, %370, %cst_143 [0] : vector<16x128xf32> to vector<128xf32>
      %372 = vector.shape_cast %371 : vector<128xf32> to vector<1x128xf32>
      %373 = math.log %372 : vector<1x128xf32>
      %cst_144 = arith.constant 0.00999999977 : f32
      %374 = vector.broadcast %cst_144 : f32 to vector<1x128xf32>
      %375 = arith.mulf %374, %373 : vector<1x128xf32>
      %376 = arith.subf %365, %375 : vector<1x128xf32>
      %cst_145 = arith.constant -0.0277258866 : f32
      %377 = vector.broadcast %cst_145 : f32 to vector<1x128xf32>
      %378 = arith.addf %376, %377 : vector<1x128xf32>
      %379 = arith.divf %24, %372 : vector<1x128xf32>
      %cst_146 = arith.constant 5.000000e-02 : f32
      %380 = vector.broadcast %cst_146 : f32 to vector<16x128xf32>
      %381 = arith.mulf %380, %arg9 : vector<16x128xf32>
      %382 = vector.broadcast %379 : vector<1x128xf32> to vector<16x128xf32>
      %383 = arith.mulf %370, %382 : vector<16x128xf32>
      %cst_147 = arith.constant 0.949999988 : f32
      %384 = vector.broadcast %cst_147 : f32 to vector<16x128xf32>
      %385 = arith.mulf %384, %383 : vector<16x128xf32>
      %386 = arith.addf %381, %385 : vector<16x128xf32>
      scf.yield %386, %378 : vector<16x128xf32>, vector<1x128xf32>
    }
    %cst_27 = arith.constant dense<0.000000e+00> : vector<16xf32>
    %49 = vector.multi_reduction <add>, %41, %cst_27 [1] : vector<16x16xf32> to vector<16xf32>
    %50 = vector.shape_cast %49 : vector<16xf32> to vector<16x1xf32>
    %cst_28 = arith.constant dense<0.000000e+00> : vector<128xf32>
    %51 = vector.multi_reduction <add>, %42, %cst_28 [0] : vector<128x128xf32> to vector<128xf32>
    %52 = vector.shape_cast %51 : vector<128xf32> to vector<1x128xf32>
    %cst_29 = arith.constant dense<0.000000e+00> : vector<16xf32>
    %53 = vector.multi_reduction <add>, %35, %cst_29 [1] : vector<16x16xf32> to vector<16xf32>
    %54 = vector.shape_cast %53 : vector<16xf32> to vector<16x1xf32>
    %cst_30 = arith.constant dense<0.000000e+00> : vector<128xf32>
    %55 = vector.multi_reduction <add>, %40, %cst_30 [1] : vector<128x128xf32> to vector<128xf32>
    %56 = vector.shape_cast %55 : vector<128xf32> to vector<128x1xf32>
    %cst_31 = arith.constant dense<0.000000e+00> : vector<16xf32>
    %57 = vector.multi_reduction <add>, %48#0, %cst_31 [1] : vector<16x128xf32> to vector<16xf32>
    %58 = vector.shape_cast %57 : vector<16xf32> to vector<16x1xf32>
    %cst_32 = arith.constant dense<0.000000e+00> : vector<128xf32>
    %59 = vector.multi_reduction <add>, %48#0, %cst_32 [0] : vector<16x128xf32> to vector<128xf32>
    %60 = vector.shape_cast %59 : vector<128xf32> to vector<1x128xf32>
    %cst_33 = arith.constant dense<0.000000e+00> : vector<16xf32>
    %61 = vector.multi_reduction <add>, %30, %cst_33 [1] : vector<16x128xf32> to vector<16xf32>
    %62 = vector.shape_cast %61 : vector<16xf32> to vector<16x1xf32>
    %cst_34 = arith.constant dense<0.000000e+00> : vector<1xf32>
    %63 = vector.multi_reduction <add>, %62, %cst_34 [0] : vector<16x1xf32> to vector<1xf32>
    %64 = vector.shape_cast %63 : vector<1xf32> to vector<1x1xf32>
    %65 = arith.mulf %50, %58 : vector<16x1xf32>
    %cst_35 = arith.constant dense<0.000000e+00> : vector<16xf32>
    %66 = vector.multi_reduction <add>, %65, %cst_35 [1] : vector<16x1xf32> to vector<16xf32>
    %67 = vector.shape_cast %66 : vector<16xf32> to vector<16x1xf32>
    %cst_36 = arith.constant dense<0.000000e+00> : vector<1xf32>
    %68 = vector.multi_reduction <add>, %67, %cst_36 [0] : vector<16x1xf32> to vector<1xf32>
    %69 = vector.shape_cast %68 : vector<1xf32> to vector<1x1xf32>
    %cst_37 = arith.constant 1.600000e+01 : f32
    %70 = vector.broadcast %cst_37 : f32 to vector<1x1xf32>
    %71 = arith.mulf %70, %69 : vector<1x1xf32>
    %72 = arith.mulf %52, %60 : vector<1x128xf32>
    %cst_38 = arith.constant dense<0.000000e+00> : vector<1xf32>
    %73 = vector.multi_reduction <add>, %72, %cst_38 [1] : vector<1x128xf32> to vector<1xf32>
    %74 = vector.shape_cast %73 : vector<1xf32> to vector<1x1xf32>
    %cst_39 = arith.constant dense<0.000000e+00> : vector<1xf32>
    %75 = vector.multi_reduction <add>, %74, %cst_39 [0] : vector<1x1xf32> to vector<1xf32>
    %76 = vector.shape_cast %75 : vector<1xf32> to vector<1x1xf32>
    %cst_40 = arith.constant 1.600000e+01 : f32
    %77 = vector.broadcast %cst_40 : f32 to vector<1x1xf32>
    %78 = arith.mulf %77, %76 : vector<1x1xf32>
    %79 = arith.addf %71, %78 : vector<1x1xf32>
    %cst_41 = arith.constant dense<0.000000e+00> : vector<16x1xf32>
    %80 = tpu.matmul %48#0, %56, %cst_41 {dimension_numbers = #tpu.dot_dimension_numbers<[1], [0], [0], [1], [0, 0, 1, 1], [], []>} : vector<16x128xf32>, vector<128x1xf32>, vector<16x1xf32> -> vector<16x1xf32>
    %81 = arith.mulf %54, %80 : vector<16x1xf32>
    %cst_42 = arith.constant dense<0.000000e+00> : vector<16xf32>
    %82 = vector.multi_reduction <add>, %81, %cst_42 [1] : vector<16x1xf32> to vector<16xf32>
    %83 = vector.shape_cast %82 : vector<16xf32> to vector<16x1xf32>
    %cst_43 = arith.constant dense<0.000000e+00> : vector<1xf32>
    %84 = vector.multi_reduction <add>, %83, %cst_43 [0] : vector<16x1xf32> to vector<1xf32>
    %85 = vector.shape_cast %84 : vector<1xf32> to vector<1x1xf32>
    %cst_44 = arith.constant 2.000000e+00 : f32
    %86 = vector.broadcast %cst_44 : f32 to vector<1x1xf32>
    %87 = arith.mulf %86, %85 : vector<1x1xf32>
    %88 = arith.subf %79, %87 : vector<1x1xf32>
    %cst_45 = arith.constant dense<0.000000e+00> : vector<16xf32>
    %89 = vector.multi_reduction <add>, %41, %cst_45 [1] : vector<16x16xf32> to vector<16xf32>
    %90 = vector.shape_cast %89 : vector<16xf32> to vector<16x1xf32>
    %cst_46 = arith.constant dense<0.000000e+00> : vector<1xf32>
    %91 = vector.multi_reduction <add>, %90, %cst_46 [0] : vector<16x1xf32> to vector<1xf32>
    %92 = vector.shape_cast %91 : vector<1xf32> to vector<1x1xf32>
    %cst_47 = arith.constant 2.560000e+02 : f32
    %93 = vector.broadcast %cst_47 : f32 to vector<1x1xf32>
    %94 = arith.mulf %93, %92 : vector<1x1xf32>
    %cst_48 = arith.constant dense<0.000000e+00> : vector<128xf32>
    %95 = vector.multi_reduction <add>, %42, %cst_48 [1] : vector<128x128xf32> to vector<128xf32>
    %96 = vector.shape_cast %95 : vector<128xf32> to vector<128x1xf32>
    %cst_49 = arith.constant dense<0.000000e+00> : vector<1xf32>
    %97 = vector.multi_reduction <add>, %96, %cst_49 [0] : vector<128x1xf32> to vector<1xf32>
    %98 = vector.shape_cast %97 : vector<1xf32> to vector<1x1xf32>
    %cst_50 = arith.constant 2.560000e+02 : f32
    %99 = vector.broadcast %cst_50 : f32 to vector<1x1xf32>
    %100 = arith.mulf %99, %98 : vector<1x1xf32>
    %101 = arith.addf %94, %100 : vector<1x1xf32>
    %cst_51 = arith.constant dense<0.000000e+00> : vector<16xf32>
    %102 = vector.multi_reduction <add>, %35, %cst_51 [1] : vector<16x16xf32> to vector<16xf32>
    %103 = vector.shape_cast %102 : vector<16xf32> to vector<16x1xf32>
    %cst_52 = arith.constant dense<0.000000e+00> : vector<1xf32>
    %104 = vector.multi_reduction <add>, %103, %cst_52 [0] : vector<16x1xf32> to vector<1xf32>
    %105 = vector.shape_cast %104 : vector<1xf32> to vector<1x1xf32>
    %cst_53 = arith.constant 2.000000e+00 : f32
    %106 = vector.broadcast %cst_53 : f32 to vector<1x1xf32>
    %107 = arith.mulf %106, %105 : vector<1x1xf32>
    %cst_54 = arith.constant dense<0.000000e+00> : vector<128xf32>
    %108 = vector.multi_reduction <add>, %40, %cst_54 [1] : vector<128x128xf32> to vector<128xf32>
    %109 = vector.shape_cast %108 : vector<128xf32> to vector<128x1xf32>
    %cst_55 = arith.constant dense<0.000000e+00> : vector<1xf32>
    %110 = vector.multi_reduction <add>, %109, %cst_55 [0] : vector<128x1xf32> to vector<1xf32>
    %111 = vector.shape_cast %110 : vector<1xf32> to vector<1x1xf32>
    %112 = arith.mulf %107, %111 : vector<1x1xf32>
    %113 = arith.subf %101, %112 : vector<1x1xf32>
    %cst_56 = arith.constant 4.000000e+01 : f32
    %114 = vector.broadcast %cst_56 : f32 to vector<1x1xf32>
    %115 = arith.mulf %114, %88 : vector<1x1xf32>
    %116 = arith.addf %64, %115 : vector<1x1xf32>
    %cst_57 = arith.constant 4.000000e+01 : f32
    %117 = vector.broadcast %cst_57 : f32 to vector<1x1xf32>
    %118 = arith.mulf %117, %113 : vector<1x1xf32>
    %119 = arith.divf %116, %118 : vector<1x1xf32>
    %cst_58 = arith.constant 5.000000e-02 : f32
    %120 = vector.broadcast %cst_58 : f32 to vector<1x1xf32>
    %121 = arith.mulf %120, %119 : vector<1x1xf32>
    %cst_59 = arith.constant 0.949999988 : f32
    %122 = vector.broadcast %cst_59 : f32 to vector<1x1xf32>
    %123 = arith.mulf %122, %11 : vector<1x1xf32>
    %124 = arith.addf %121, %123 : vector<1x1xf32>
    %125 = vector.broadcast %124 : vector<1x1xf32> to vector<16x128xf32>
    %126 = arith.subf %48#0, %125 : vector<16x128xf32>
    %cst_60 = arith.constant 0.000000e+00 : f32
    %127 = vector.broadcast %cst_60 : f32 to vector<16x128xf32>
    %128 = arith.select %18, %126, %127 : vector<16x128xi1>, vector<16x128xf32>
    %129 = arith.mulf %30, %128 : vector<16x128xf32>
    %cst_61 = arith.constant dense<0.000000e+00> : vector<16xf32>
    %130 = vector.multi_reduction <add>, %129, %cst_61 [1] : vector<16x128xf32> to vector<16xf32>
    %131 = vector.shape_cast %130 : vector<16xf32> to vector<16x1xf32>
    %cst_62 = arith.constant dense<0.000000e+00> : vector<1xf32>
    %132 = vector.multi_reduction <add>, %131, %cst_62 [0] : vector<16x1xf32> to vector<1xf32>
    %133 = vector.shape_cast %132 : vector<1xf32> to vector<1x1xf32>
    %cst_63 = arith.constant dense<0.000000e+00> : vector<16xf32>
    %134 = vector.multi_reduction <add>, %128, %cst_63 [1] : vector<16x128xf32> to vector<16xf32>
    %135 = vector.shape_cast %134 : vector<16xf32> to vector<16x1xf32>
    %cst_64 = arith.constant dense<0.000000e+00> : vector<128xf32>
    %136 = vector.multi_reduction <add>, %128, %cst_64 [0] : vector<16x128xf32> to vector<128xf32>
    %137 = vector.shape_cast %136 : vector<128xf32> to vector<1x128xf32>
    %cst_65 = arith.constant dense<0.000000e+00> : vector<16x1xf32>
    %138 = tpu.matmul %41, %135, %cst_65 {dimension_numbers = #tpu.dot_dimension_numbers<[1], [0], [0], [1], [0, 0, 1, 1], [], []>} : vector<16x16xf32>, vector<16x1xf32>, vector<16x1xf32> -> vector<16x1xf32>
    %cst_66 = arith.constant dense<0.000000e+00> : vector<1x128xf32>
    %139 = tpu.matmul %137, %42, %cst_66 {dimension_numbers = #tpu.dot_dimension_numbers<[1], [0], [0], [1], [0, 0, 1, 1], [], []>} : vector<1x128xf32>, vector<128x128xf32>, vector<1x128xf32> -> vector<1x128xf32>
    %140 = vector.broadcast %138 : vector<16x1xf32> to vector<16x128xf32>
    %141 = vector.broadcast %139 : vector<1x128xf32> to vector<16x128xf32>
    %142 = arith.addf %140, %141 : vector<16x128xf32>
    %cst_67 = arith.constant dense<0.000000e+00> : vector<16x128xf32>
    %143 = tpu.matmul %35, %128, %cst_67 {dimension_numbers = #tpu.dot_dimension_numbers<[1], [0], [0], [1], [0, 0, 1, 1], [], []>} : vector<16x16xf32>, vector<16x128xf32>, vector<16x128xf32> -> vector<16x128xf32>
    %cst_68 = arith.constant dense<0.000000e+00> : vector<16x128xf32>
    %144 = tpu.matmul %143, %40, %cst_68 {dimension_numbers = #tpu.dot_dimension_numbers<[1], [1], [0], [0], [0, 0, 1, 0], [], []>} : vector<16x128xf32>, vector<128x128xf32>, vector<16x128xf32> -> vector<16x128xf32>
    %cst_69 = arith.constant 2.000000e+00 : f32
    %145 = vector.broadcast %cst_69 : f32 to vector<16x128xf32>
    %146 = arith.mulf %145, %144 : vector<16x128xf32>
    %147 = arith.subf %142, %146 : vector<16x128xf32>
    %148 = arith.mulf %147, %128 : vector<16x128xf32>
    %cst_70 = arith.constant dense<0.000000e+00> : vector<16xf32>
    %149 = vector.multi_reduction <add>, %148, %cst_70 [1] : vector<16x128xf32> to vector<16xf32>
    %150 = vector.shape_cast %149 : vector<16xf32> to vector<16x1xf32>
    %cst_71 = arith.constant dense<0.000000e+00> : vector<1xf32>
    %151 = vector.multi_reduction <add>, %150, %cst_71 [0] : vector<16x1xf32> to vector<1xf32>
    %152 = vector.shape_cast %151 : vector<1xf32> to vector<1x1xf32>
    %cst_72 = arith.constant 2.000000e+01 : f32
    %153 = vector.broadcast %cst_72 : f32 to vector<1x1xf32>
    %154 = arith.mulf %153, %152 : vector<1x1xf32>
    %155 = arith.addf %133, %154 : vector<1x1xf32>
    %cst_73 = arith.constant 2.000000e+01 : f32
    %156 = vector.broadcast %cst_73 : f32 to vector<1x1xf32>
    %157 = arith.addf %155, %156 : vector<1x1xf32>
    %c0_74 = arith.constant 0 : index
    %c0_75 = arith.constant 0 : index
    %c0_76 = arith.constant 0 : index
    %158 = vector.load %arg6[%c0_74, %c0_75, %c0_76] : memref<1x16x128xf32, #tpu.memory_space<vmem>>, vector<1x16x128xf32>
    %159 = vector.shape_cast %158 : vector<1x16x128xf32> to vector<16x128xf32>
    %160 = vector.shape_cast %48#0 : vector<16x128xf32> to vector<1x16x128xf32>
    tpu.vector_store %arg6[%c0_74, %c0_75, %c0_76], %160 {strides = array<i32>} : memref<1x16x128xf32, #tpu.memory_space<vmem>>, vector<1x16x128xf32>,
    %161 = tpu.iota {dimensions = array<i32: 1>} : vector<1x128xi32>
    %c0_i32_77 = arith.constant 0 : i32
    %162 = vector.broadcast %c0_i32_77 : i32 to vector<1x128xi32>
    %163 = arith.cmpi eq, %161, %162 : vector<1x128xi32>
    %cst_78 = arith.constant 0.000000e+00 : f32
    %164 = vector.shape_cast %157 : vector<1x1xf32> to vector<1x1xf32>
    %165 = vector.broadcast %164 : vector<1x1xf32> to vector<1x128xf32>
    %166 = vector.broadcast %cst_78 : f32 to vector<1x128xf32>
    %167 = arith.select %163, %165, %166 : vector<1x128xi1>, vector<1x128xf32>
    %c1_i32_79 = arith.constant 1 : i32
    %168 = vector.broadcast %c1_i32_79 : i32 to vector<1x128xi32>
    %169 = arith.cmpi eq, %161, %168 : vector<1x128xi32>
    %cst_80 = arith.constant 0.000000e+00 : f32
    %170 = vector.shape_cast %124 : vector<1x1xf32> to vector<1x1xf32>
    %171 = vector.broadcast %170 : vector<1x1xf32> to vector<1x128xf32>
    %172 = vector.broadcast %cst_80 : f32 to vector<1x128xf32>
    %173 = arith.select %169, %171, %172 : vector<1x128xi1>, vector<1x128xf32>
    %174 = arith.addf %167, %173 : vector<1x128xf32>
    %c0_81 = arith.constant 0 : index
    %c0_82 = arith.constant 0 : index
    %c0_83 = arith.constant 0 : index
    %175 = vector.load %arg7[%c0_81, %c0_82, %c0_83] : memref<1x1x128xf32, #tpu.memory_space<vmem>>, vector<1x1x128xf32>
    %176 = vector.shape_cast %175 : vector<1x1x128xf32> to vector<1x128xf32>
    %177 = vector.shape_cast %174 : vector<1x128xf32> to vector<1x1x128xf32>
    tpu.vector_store %arg7[%c0_81, %c0_82, %c0_83], %177 {strides = array<i32>} : memref<1x1x128xf32, #tpu.memory_space<vmem>>, vector<1x1x128xf32>,
    return
  }
  func.func @transform_0(%arg0: i32) -> (i32, i32, i32) {
    %c0_i32 = arith.constant 0 : i32
    %c0_i32_0 = arith.constant 0 : i32
    %c0_i32_1 = arith.constant 0 : i32
    return %arg0, %c0_i32, %c0_i32_0 : i32, i32, i32
  }
  func.func @transform_1(%arg0: i32) -> (i32, i32, i32) {
    %c0_i32 = arith.constant 0 : i32
    %c0_i32_0 = arith.constant 0 : i32
    %c0_i32_1 = arith.constant 0 : i32
    return %arg0, %c0_i32, %c0_i32_0 : i32, i32, i32
  }
  func.func @transform_2(%arg0: i32) -> (i32, i32, i32) {
    %c0_i32 = arith.constant 0 : i32
    %c0_i32_0 = arith.constant 0 : i32
    %c0_i32_1 = arith.constant 0 : i32
    return %arg0, %c0_i32, %c0_i32_0 : i32, i32, i32
  }
  func.func @transform_3(%arg0: i32) -> (i32, i32, i32) {
    %c0_i32 = arith.constant 0 : i32
    %c0_i32_0 = arith.constant 0 : i32
    %c0_i32_1 = arith.constant 0 : i32
    return %arg0, %c0_i32, %c0_i32_0 : i32, i32, i32
  }
  func.func @transform_4(%arg0: i32) -> (i32, i32, i32) {
    %c0_i32 = arith.constant 0 : i32
    %c0_i32_0 = arith.constant 0 : i32
    %c0_i32_1 = arith.constant 0 : i32
    return %arg0, %c0_i32, %c0_i32_0 : i32, i32, i32
  }
  func.func @transform_5(%arg0: i32) -> (i32, i32, i32) {
    %c0_i32 = arith.constant 0 : i32
    %c0_i32_0 = arith.constant 0 : i32
    %c0_i32_1 = arith.constant 0 : i32
    return %arg0, %c0_i32, %c0_i32_0 : i32, i32, i32
  }
  func.func @transform_6(%arg0: i32) -> (i32, i32, i32) {
    %c0_i32 = arith.constant 0 : i32
    %c0_i32_0 = arith.constant 0 : i32
    %c0_i32_1 = arith.constant 0 : i32
    return %arg0, %c0_i32, %c0_i32_0 : i32, i32, i32
  }
}

</mosaic_0001>

<llo_original>
// kernel: tpu_custom_call.1
$region0: #{tpu_custom_call.1}
  #allocation0 [shape = 'u32[]', space=smem, size = 0x4, offset = 0x4, fixed_abs, tag = 'smem constant byte address 0x4 - core index']
  #allocation1 [shape = 'u32[72,128]{1,0:T(1,128)}', space=vmem, size = 0x9000, scoped, tag = 'internal scratch']
  %s0 = inlined_call_operand.vmem [shape: f32[2,1,1], index: 0, kind: input, shape index: {}]
  %s1 = inlined_call_operand.vmem [shape: f32[2,16,32], index: 1, kind: input, shape index: {}]
  %s2 = inlined_call_operand.vmem [shape: f32[2,128,32], index: 2, kind: input, shape index: {}]
  %s3 = inlined_call_operand.vmem [shape: bf16[2,16,16], index: 3, kind: input, shape index: {}]
  %s4 = inlined_call_operand.vmem [shape: bf16[2,128,128], index: 4, kind: input, shape index: {}]
  %s5 = inlined_call_operand.hbm [shape: f32[2,16,128], index: 5, kind: output, shape index: {0}]
  %s6 = inlined_call_operand.hbm [shape: f32[2,1,128], index: 6, kind: output, shape index: {1}]
  %7 = xla_tuple %s5, %s6
  %s8 = sld [smem:[#allocation0]]
  $region68: #{tpu_custom_call.1} parent=0
    _
  %s10 = ssub.s32 1, %s8
  %s11 = scalar_select 0, %s10, %s8
  $region1: #{tpu_custom_call.1} parent=0
    #allocation2 [shape = 'u8[16384]{0}', space=vmem, size = 0x4000, scoped, tag = 'output window, operand 0']
    #allocation3 [shape = 's32[2]{0}', space=sflag, size = 0x8, scoped, tag = 'scoped memory for tpu_custom_call.1']
    #allocation4 [shape = 'u8[1024]{0}', space=vmem, size = 0x400, scoped, tag = 'output window, operand 1']
    #allocation5 [shape = 's32[2]{0}', space=sflag, size = 0x8, scoped, tag = 'scoped memory for tpu_custom_call.1']
    %12 = vsyncpa [#allocation3], 0
    %s13 = scalar_lea.sflag [#allocation3], 1
    %14 = vsyncpa %s13, 0
    %15 = vsyncpa [#allocation5], 0
    %s16 = scalar_lea.sflag [#allocation5], 1
    %17 = vsyncpa %s16, 0
    loop: start=0, step=1, limit=4
    $region2: #{tpu_custom_call.1} parent=1 // loop_pre_header
      _
    $region3: #{tpu_custom_call.1} parent=1 // loop_header
      %s19 = sphi 0, %s23
      %p20 = scmp.ge.s32.totalorder %s19, 4
      %s29 = sphi 0, %s31
      %s32 = sphi 0, %s29
      %s33 = sphi 0, %s32
      %s49 = sphi 0, %s33
      %s55 = sphi 0, %s57
      %s58 = sphi 0, %s55
      %s59 = sphi 0, %s58
      %s75 = sphi 0, %s59
      %s81 = sphi 0, %s83
      %s84 = sphi 0, %s81
      %s85 = sphi 0, %s84
      %s101 = sphi 0, %s85
      %s107 = sphi 0, %s109
      %s110 = sphi 0, %s107
      %s111 = sphi 0, %s110
      %s127 = sphi 0, %s111
      %s133 = sphi 0, %s135
      %s136 = sphi 0, %s133
      %s137 = sphi 0, %s136
      %s153 = sphi 0, %s137
      %s159 = sphi 0, %s161
      %s162 = sphi 0, %s159
      %s163 = sphi 0, %s162
      %s179 = sphi 0, %s163
      %s185 = sphi 0, %s187
      %s188 = sphi 0, %s185
      %s189 = sphi 0, %s188
      %s205 = sphi 0, %s189
    $region4: #{tpu_custom_call.1} parent=1 // loop_header_branch
      %22 = sbr.rel (%p20) target = $region8
    $region5: #{tpu_custom_call.1} parent=1 // loop_body
      %s24 = ssub.s32 %s19, 1
      %s25 = ssub.s32 %s19, 2
      %s26 = sadd.s32 %s19, 1
      %s27 = ssub.s32 %s19, %s26
      %p28 = scmp.eq.s32.totalorder %s27, 0
      %s30 = sadd.s32 %s29, 1
      %s31 = scalar_select %p28, %s29, %s30
      %p34 = pneg %p28
      %p35 = scmp.eq.s32.totalorder %s19, 1
      %p36 = por %p34, %p35
      %p37 = scmp.ne.s32.totalorder %s29, %s32
      %p38 = scmp.eq.s32.totalorder %s19, 0
      %p39 = por %p37, %p38
      %p40 = scmp.ne.s32.totalorder %s29, %s32
      %p41 = scmp.eq.s32.totalorder %s24, 1
      %p42 = por %p40, %p41
      %p43 = scmp.ne.s32.totalorder %s32, %s33
      %p44 = scmp.eq.s32.totalorder %s24, 0
      %p45 = por %p43, %p44
      %p46 = scmp.ne.s32.totalorder %s32, %s33
      %p47 = scmp.eq.s32.totalorder %s25, 1
      %p48 = por %p46, %p47
      %p50 = scmp.ne.s32.totalorder %s33, %s49
      %p51 = scmp.eq.s32.totalorder %s25, 0
      %p52 = por %p50, %p51
      %s53 = ssub.s32 %s19, %s26
      %p54 = scmp.eq.s32.totalorder %s53, 0
      %s56 = sadd.s32 %s55, 1
      %s57 = scalar_select %p54, %s55, %s56
      %p60 = pneg %p54
      %p61 = scmp.eq.s32.totalorder %s19, 1
      %p62 = por %p60, %p61
      %p63 = scmp.ne.s32.totalorder %s55, %s58
      %p64 = scmp.eq.s32.totalorder %s19, 0
      %p65 = por %p63, %p64
      %p66 = scmp.ne.s32.totalorder %s55, %s58
      %p67 = scmp.eq.s32.totalorder %s24, 1
      %p68 = por %p66, %p67
      %p69 = scmp.ne.s32.totalorder %s58, %s59
      %p70 = scmp.eq.s32.totalorder %s24, 0
      %p71 = por %p69, %p70
      %p72 = scmp.ne.s32.totalorder %s58, %s59
      %p73 = scmp.eq.s32.totalorder %s25, 1
      %p74 = por %p72, %p73
      %p76 = scmp.ne.s32.totalorder %s59, %s75
      %p77 = scmp.eq.s32.totalorder %s25, 0
      %p78 = por %p76, %p77
      %s79 = ssub.s32 %s19, %s26
      %p80 = scmp.eq.s32.totalorder %s79, 0
      %s82 = sadd.s32 %s81, 1
      %s83 = scalar_select %p80, %s81, %s82
      %p86 = pneg %p80
      %p87 = scmp.eq.s32.totalorder %s19, 1
      %p88 = por %p86, %p87
      %p89 = scmp.ne.s32.totalorder %s81, %s84
      %p90 = scmp.eq.s32.totalorder %s19, 0
      %p91 = por %p89, %p90
      %p92 = scmp.ne.s32.totalorder %s81, %s84
      %p93 = scmp.eq.s32.totalorder %s24, 1
      %p94 = por %p92, %p93
      %p95 = scmp.ne.s32.totalorder %s84, %s85
      %p96 = scmp.eq.s32.totalorder %s24, 0
      %p97 = por %p95, %p96
      %p98 = scmp.ne.s32.totalorder %s84, %s85
      %p99 = scmp.eq.s32.totalorder %s25, 1
      %p100 = por %p98, %p99
      %p102 = scmp.ne.s32.totalorder %s85, %s101
      %p103 = scmp.eq.s32.totalorder %s25, 0
      %p104 = por %p102, %p103
      %s105 = ssub.s32 %s19, %s26
      %p106 = scmp.eq.s32.totalorder %s105, 0
      %s108 = sadd.s32 %s107, 1
      %s109 = scalar_select %p106, %s107, %s108
      %p112 = pneg %p106
      %p113 = scmp.eq.s32.totalorder %s19, 1
      %p114 = por %p112, %p113
      %p115 = scmp.ne.s32.totalorder %s107, %s110
      %p116 = scmp.eq.s32.totalorder %s19, 0
      %p117 = por %p115, %p116
      %p118 = scmp.ne.s32.totalorder %s107, %s110
      %p119 = scmp.eq.s32.totalorder %s24, 1
      %p120 = por %p118, %p119
      %p121 = scmp.ne.s32.totalorder %s110, %s111
      %p122 = scmp.eq.s32.totalorder %s24, 0
      %p123 = por %p121, %p122
      %p124 = scmp.ne.s32.totalorder %s110, %s111
      %p125 = scmp.eq.s32.totalorder %s25, 1
      %p126 = por %p124, %p125
      %p128 = scmp.ne.s32.totalorder %s111, %s127
      %p129 = scmp.eq.s32.totalorder %s25, 0
      %p130 = por %p128, %p129
      %s131 = ssub.s32 %s19, %s26
      %p132 = scmp.eq.s32.totalorder %s131, 0
      %s134 = sadd.s32 %s133, 1
      %s135 = scalar_select %p132, %s133, %s134
      %p138 = pneg %p132
      %p139 = scmp.eq.s32.totalorder %s19, 1
      %p140 = por %p138, %p139
      %p141 = scmp.ne.s32.totalorder %s133, %s136
      %p142 = scmp.eq.s32.totalorder %s19, 0
      %p143 = por %p141, %p142
      %p144 = scmp.ne.s32.totalorder %s133, %s136
      %p145 = scmp.eq.s32.totalorder %s24, 1
      %p146 = por %p144, %p145
      %p147 = scmp.ne.s32.totalorder %s136, %s137
      %p148 = scmp.eq.s32.totalorder %s24, 0
      %p149 = por %p147, %p148
      %p150 = scmp.ne.s32.totalorder %s136, %s137
      %p151 = scmp.eq.s32.totalorder %s25, 1
      %p152 = por %p150, %p151
      %p154 = scmp.ne.s32.totalorder %s137, %s153
      %p155 = scmp.eq.s32.totalorder %s25, 0
      %p156 = por %p154, %p155
      %s157 = ssub.s32 %s19, %s26
      %p158 = scmp.eq.s32.totalorder %s157, 0
      %s160 = sadd.s32 %s159, 1
      %s161 = scalar_select %p158, %s159, %s160
      %p164 = pneg %p158
      %p165 = scmp.eq.s32.totalorder %s19, 1
      %p166 = por %p164, %p165
      %p167 = scmp.ne.s32.totalorder %s159, %s162
      %p168 = scmp.eq.s32.totalorder %s19, 0
      %p169 = por %p167, %p168
      %p170 = scmp.ne.s32.totalorder %s159, %s162
      %p171 = scmp.eq.s32.totalorder %s24, 1
      %p172 = por %p170, %p171
      %p173 = scmp.ne.s32.totalorder %s162, %s163
      %p174 = scmp.eq.s32.totalorder %s24, 0
      %p175 = por %p173, %p174
      %p176 = scmp.ne.s32.totalorder %s162, %s163
      %p177 = scmp.eq.s32.totalorder %s25, 1
      %p178 = por %p176, %p177
      %p180 = scmp.ne.s32.totalorder %s163, %s179
      %p181 = scmp.eq.s32.totalorder %s25, 0
      %p182 = por %p180, %p181
      %s183 = ssub.s32 %s19, %s26
      %p184 = scmp.eq.s32.totalorder %s183, 0
      %s186 = sadd.s32 %s185, 1
      %s187 = scalar_select %p184, %s185, %s186
      %p190 = pneg %p184
      %p191 = scmp.eq.s32.totalorder %s19, 1
      %p192 = por %p190, %p191
      %p193 = scmp.ne.s32.totalorder %s185, %s188
      %p194 = scmp.eq.s32.totalorder %s19, 0
      %p195 = por %p193, %p194
      %p196 = scmp.ne.s32.totalorder %s185, %s188
      %p197 = scmp.eq.s32.totalorder %s24, 1
      %p198 = por %p196, %p197
      %p199 = scmp.ne.s32.totalorder %s188, %s189
      %p200 = scmp.eq.s32.totalorder %s24, 0
      %p201 = por %p199, %p200
      %p202 = scmp.ne.s32.totalorder %s188, %s189
      %p203 = scmp.eq.s32.totalorder %s25, 1
      %p204 = por %p202, %p203
      %p206 = scmp.ne.s32.totalorder %s189, %s205
      %p207 = scmp.eq.s32.totalorder %s25, 0
      %p208 = por %p206, %p207
      %p209 = scmp.le.s32.totalorder 1, %s19
      %p210 = scmp.lt.s32.totalorder %s19, 3
      %p211 = pnand %p209, %p210
      %p212 = pneg %p211
      // Predicated region
      $region9: #{tpu_custom_call.1} parent=5 // pred_check
        _
      $region10: #{tpu_custom_call.1} parent=5 // pred_check_branch
        %214 = sbr.rel (%p211) target = $region12
      $region11: #{tpu_custom_call.1} parent=5 // pred_region
        %s215 = ssub.s32 %s19, 1
      $region12: #{tpu_custom_call.1} parent=5 // pred_fallthru
        _
      %p216 = scmp.lt.s32.totalorder %s19, 2
      // Predicated region
      $region13: #{tpu_custom_call.1} parent=5 // pred_check
        %p217 = pneg %p216
      $region14: #{tpu_custom_call.1} parent=5 // pred_check_branch
        %219 = sbr.rel (%p217) target = $region16
      $region15: #{tpu_custom_call.1} parent=5 // pred_region
        // Predicated region
        $region17: #{tpu_custom_call.1} parent=15 // pred_check
          %p220 = pneg %p39
        $region18: #{tpu_custom_call.1} parent=15 // pred_check_branch
          %222 = sbr.rel (%p220) target = $region20
        $region19: #{tpu_custom_call.1} parent=15 // pred_region
          %p223 = scmp.lt.s32.totalorder %s19, 1
          %s224 = scalar_select %p223, %s19, 1
          %s225 = scalar_lea.vmem %s0, %s224
        $region20: #{tpu_custom_call.1} parent=15 // pred_fallthru
          _
        // Predicated region
        $region21: #{tpu_custom_call.1} parent=15 // pred_check
          %p226 = pneg %p65
        $region22: #{tpu_custom_call.1} parent=15 // pred_check_branch
          %228 = sbr.rel (%p226) target = $region24
        $region23: #{tpu_custom_call.1} parent=15 // pred_region
          %p229 = scmp.lt.s32.totalorder %s19, 1
          %s230 = scalar_select %p229, %s19, 1
          %s231 = smul.addr %s230, 2
          %s232 = smul.addr %s231, 8
          %s233 = scalar_lea.vmem %s1, %s232
        $region24: #{tpu_custom_call.1} parent=15 // pred_fallthru
          _
        // Predicated region
        $region25: #{tpu_custom_call.1} parent=15 // pred_check
          %p234 = pneg %p91
        $region26: #{tpu_custom_call.1} parent=15 // pred_check_branch
          %236 = sbr.rel (%p234) target = $region28
        $region27: #{tpu_custom_call.1} parent=15 // pred_region
          %p237 = scmp.lt.s32.totalorder %s19, 1
          %s238 = scalar_select %p237, %s19, 1
          %s239 = smul.addr %s238, 16
          %s240 = smul.addr %s239, 8
          %s241 = scalar_lea.vmem %s2, %s240
        $region28: #{tpu_custom_call.1} parent=15 // pred_fallthru
          _
        // Predicated region
        $region29: #{tpu_custom_call.1} parent=15 // pred_check
          %p242 = pneg %p117
        $region30: #{tpu_custom_call.1} parent=15 // pred_check_branch
          %244 = sbr.rel (%p242) target = $region32
        $region31: #{tpu_custom_call.1} parent=15 // pred_region
          %p245 = scmp.lt.s32.totalorder %s19, 1
          %s246 = scalar_select %p245, %s19, 1
          %s247 = smul.addr %s246, 2
          %s248 = smul.addr %s247, 4
          %s249 = scalar_lea.vmem %s3, %s248
        $region32: #{tpu_custom_call.1} parent=15 // pred_fallthru
          _
        // Predicated region
        $region33: #{tpu_custom_call.1} parent=15 // pred_check
          %p250 = pneg %p143
        $region34: #{tpu_custom_call.1} parent=15 // pred_check_branch
          %252 = sbr.rel (%p250) target = $region36
        $region35: #{tpu_custom_call.1} parent=15 // pred_region
          %p253 = scmp.lt.s32.totalorder %s19, 1
          %s254 = scalar_select %p253, %s19, 1
          %s255 = smul.addr %s254, 16
          %s256 = smul.addr %s255, 4
          %s257 = scalar_lea.vmem %s4, %s256
        $region36: #{tpu_custom_call.1} parent=15 // pred_fallthru
          _
      $region16: #{tpu_custom_call.1} parent=5 // pred_fallthru
        _
      %p258 = scmp.le.s32.totalorder 1, %s19
      %p259 = scmp.lt.s32.totalorder %s19, 3
      %p260 = pnand %p258, %p259
      %p261 = pneg %p260
      // Predicated region
      $region37: #{tpu_custom_call.1} parent=5 // pred_check
        _
      $region38: #{tpu_custom_call.1} parent=5 // pred_check_branch
        %263 = sbr.rel (%p260) target = $region40
      $region39: #{tpu_custom_call.1} parent=5 // pred_region
        %s264 = ssub.s32 %s19, 1
        %p265 = scmp.lt.s32.totalorder %s24, 1
        %s266 = scalar_select %p265, %s24, 1
        %s267 = scalar_lea.vmem %s0, %s266
        %p268 = pneg %p45
        %p269 = pneg %p42
        %p270 = scmp.lt.s32.totalorder %s24, 1
        %s271 = scalar_select %p270, %s24, 1
        %s272 = smul.addr %s271, 2
        %s273 = smul.addr %s272, 8
        %s274 = scalar_lea.vmem %s1, %s273
        %p275 = pneg %p71
        %p276 = pneg %p68
        %p277 = scmp.lt.s32.totalorder %s24, 1
        %s278 = scalar_select %p277, %s24, 1
        %s279 = smul.addr %s278, 16
        %s280 = smul.addr %s279, 8
        %s281 = scalar_lea.vmem %s2, %s280
        %p282 = pneg %p97
        %p283 = pneg %p94
        %p284 = scmp.lt.s32.totalorder %s24, 1
        %s285 = scalar_select %p284, %s24, 1
        %s286 = smul.addr %s285, 2
        %s287 = smul.addr %s286, 4
        %s288 = scalar_lea.vmem %s3, %s287
        %p289 = pneg %p123
        %p290 = pneg %p120
        %p291 = scmp.lt.s32.totalorder %s24, 1
        %s292 = scalar_select %p291, %s24, 1
        %s293 = smul.addr %s292, 16
        %s294 = smul.addr %s293, 4
        %s295 = scalar_lea.vmem %s4, %s294
        %p296 = pneg %p149
        %p297 = pneg %p146
        %p298 = pneg %p175
        %p299 = pneg %p172
        %s300 = sand.u32 %s162, 1
        %s301 = scalar_lea.sflag [#allocation3], %s300
        %s302 = sand.u32 %s162, 1
        %s303 = smul.addr %s302, 16
        %s304 = scalar_lea.vmem [#allocation2], %s303
        %p305 = pneg %p201
        %p306 = pneg %p198
        %s307 = sand.u32 %s188, 1
        %s308 = scalar_lea.sflag [#allocation5], %s307
        %s309 = sand.u32 %s188, 1
        %s310 = scalar_lea.vmem [#allocation4], %s309
        %p311 = scmp.lt.s32.totalorder %s24, 1
        %s312 = scalar_select %p311, %s24, 1
        %s313 = scalar_lea.vmem %s0, %s312
        %p314 = scmp.lt.s32.totalorder %s24, 1
        %s315 = scalar_select %p314, %s24, 1
        %s316 = smul.addr %s315, 2
        %s317 = smul.addr %s316, 8
        %s318 = scalar_lea.vmem %s1, %s317
        %p319 = scmp.lt.s32.totalorder %s24, 1
        %s320 = scalar_select %p319, %s24, 1
        %s321 = smul.addr %s320, 16
        %s322 = smul.addr %s321, 8
        %s323 = scalar_lea.vmem %s2, %s322
        %p324 = scmp.lt.s32.totalorder %s24, 1
        %s325 = scalar_select %p324, %s24, 1
        %s326 = smul.addr %s325, 2
        %s327 = smul.addr %s326, 4
        %s328 = scalar_lea.vmem %s3, %s327
        %p329 = scmp.lt.s32.totalorder %s24, 1
        %s330 = scalar_select %p329, %s24, 1
        %s331 = smul.addr %s330, 16
        %s332 = smul.addr %s331, 4
        %s333 = scalar_lea.vmem %s4, %s332
        %v334 = vld [vmem:[%s318] sm:$0xff]
        %v335 = vld [vmem:[%s318 + $0x8] sm:$0xff]
        %v336 = vld [vmem:[%s323] sm:$0xff]
        %v337 = vld [vmem:[%s323 + $0x8] sm:$0xff]
        %v338 = vld [vmem:[%s323 + $0x10] sm:$0xff]
        %v339 = vld [vmem:[%s323 + $0x18] sm:$0xff]
        %v340 = vld [vmem:[%s323 + $0x20] sm:$0xff]
        %v341 = vld [vmem:[%s323 + $0x28] sm:$0xff]
        %v342 = vld [vmem:[%s323 + $0x30] sm:$0xff]
        %v343 = vld [vmem:[%s323 + $0x38] sm:$0xff]
        %v344 = vld [vmem:[%s323 + $0x40] sm:$0xff]
        %v345 = vld [vmem:[%s323 + $0x48] sm:$0xff]
        %v346 = vld [vmem:[%s323 + $0x50] sm:$0xff]
        %v347 = vld [vmem:[%s323 + $0x58] sm:$0xff]
        %v348 = vld [vmem:[%s323 + $0x60] sm:$0xff]
        %v349 = vld [vmem:[%s323 + $0x68] sm:$0xff]
        %v350 = vld [vmem:[%s323 + $0x70] sm:$0xff]
        %v351 = vld [vmem:[%s323 + $0x78] sm:$0xff]
        %v352 = vld [vmem:[%s328] sm:$0xf]
        %v353 = vld [vmem:[%s328 + $0x4] sm:$0xf]
        %v354 = vunpack.c.l.bf16 %v352
        %v355 = vunpack.c.l.bf16 %v353
        %v356 = vld [vmem:[%s333] sm:$0xf]
        %v357 = vld [vmem:[%s333 + $0x4] sm:$0xf]
        %v358 = vld [vmem:[%s333 + $0x8] sm:$0xf]
        %v359 = vld [vmem:[%s333 + $0xc] sm:$0xf]
        %v360 = vld [vmem:[%s333 + $0x10] sm:$0xf]
        %v361 = vld [vmem:[%s333 + $0x14] sm:$0xf]
        %v362 = vld [vmem:[%s333 + $0x18] sm:$0xf]
        %v363 = vld [vmem:[%s333 + $0x1c] sm:$0xf]
        %v364 = vld [vmem:[%s333 + $0x20] sm:$0xf]
        %v365 = vld [vmem:[%s333 + $0x24] sm:$0xf]
        %v366 = vld [vmem:[%s333 + $0x28] sm:$0xf]
        %v367 = vld [vmem:[%s333 + $0x2c] sm:$0xf]
        %v368 = vld [vmem:[%s333 + $0x30] sm:$0xf]
        %v369 = vld [vmem:[%s333 + $0x34] sm:$0xf]
        %v370 = vld [vmem:[%s333 + $0x38] sm:$0xf]
        %v371 = vld [vmem:[%s333 + $0x3c] sm:$0xf]
        %v372 = vunpack.c.l.bf16 %v356
        %v373 = vunpack.c.l.bf16 %v357
        %v374 = vunpack.c.l.bf16 %v358
        %v375 = vunpack.c.l.bf16 %v359
        %v376 = vunpack.c.l.bf16 %v360
        %v377 = vunpack.c.l.bf16 %v361
        %v378 = vunpack.c.l.bf16 %v362
        %v379 = vunpack.c.l.bf16 %v363
        %v380 = vunpack.c.l.bf16 %v364
        %v381 = vunpack.c.l.bf16 %v365
        %v382 = vunpack.c.l.bf16 %v366
        %v383 = vunpack.c.l.bf16 %v367
        %v384 = vunpack.c.l.bf16 %v368
        %v385 = vunpack.c.l.bf16 %v369
        %v386 = vunpack.c.l.bf16 %v370
        %v387 = vunpack.c.l.bf16 %v371
        %v388 = vld [vmem:[%s313] sm:$0x1]
        %v389 = vlaneseq
        %v390 = vshrl.u32 %v389, 7
        %v391 = vadd.s32 %v390, 8
        %vm392 = vcmp.lt.s32.totalorder %v390, 16
        %vm393 = vcmp.lt.s32.totalorder %v391, 16
        %v394 = vlaneseq
        %v395 = vand.u32 %v394, 127
        %vm396 = vcmp.lt.s32.totalorder %v395, 16
        %vm397 = vmand %vm392, %vm396
        %vm398 = vmand %vm393, %vm396
        %v399 = vsel %vm396, 0.0625, 0.0
        %vm400 = vcmask 261120
        %v402 = vsel %vm400, %v334, 0
        %v405 = vsel %vm400, %v335, 0
        %v408 = vsel %vm400, %v336, 0
        %v411 = vsel %vm400, %v337, 0
        %v414 = vsel %vm400, %v338, 0
        %v417 = vsel %vm400, %v339, 0
        %v420 = vsel %vm400, %v340, 0
        %v423 = vsel %vm400, %v341, 0
        %v426 = vsel %vm400, %v342, 0
        %v429 = vsel %vm400, %v343, 0
        %v432 = vsel %vm400, %v344, 0
        %v435 = vsel %vm400, %v345, 0
        %v438 = vsel %vm400, %v346, 0
        %v441 = vsel %vm400, %v347, 0
        %v444 = vsel %vm400, %v348, 0
        %v447 = vsel %vm400, %v349, 0
        %v450 = vsel %vm400, %v350, 0
        %v453 = vsel %vm400, %v351, 0
        %455 = vmatpush.xpose.msra.mxu0 %v453
        %456 = vmatpush.xpose.msra.mxu0 %v450
        %457 = vmatpush.xpose.msra.mxu0 %v447
        %458 = vmatpush.xpose.msra.mxu0 %v444
        %459 = vmatpush.xpose.msra.mxu0 %v441
        %460 = vmatpush.xpose.msra.mxu0 %v438
        %461 = vmatpush.xpose.msra.mxu0 %v435
        %462 = vmatpush.xpose.msra.mxu0 %v432
        %463 = vmatpush.xpose.msra.mxu0 %v429
        %464 = vmatpush.xpose.msra.mxu0 %v426
        %465 = vmatpush.xpose.msra.mxu0 %v423
        %466 = vmatpush.xpose.msra.mxu0 %v420
        %467 = vmatpush.xpose.msra.mxu0 %v417
        %468 = vmatpush.xpose.msra.mxu0 %v414
        %469 = vmatpush.xpose.msra.mxu0 %v411
        %470 = vmatpush.xpose.msra.mxu0 %v408
        %471 = vmatmul.f32.gmra.mxu0 %v402
        %v472 = vpop.f32.mrf.mxu0
        %v473 = vadd.f32 0.0, %v472
        %474 = vmatmul.f32.gmra.mxu0 %v405
        %v475 = vpop.f32.mrf.mxu0
        %v476 = vadd.f32 0.0, %v475
        %477 = vdwg.mxu0
        %v478 = vsub.f32 0.0, %v473
        %v479 = vsub.f32 0.0, %v476
        %v480 = vmul.f32 %v478, 1.442695
        %v481 = vpow.pop %v480
        %v482 = vmul.f32 %v479, 1.442695
        %v483 = vpow.pop %v482
        %v484 = vsel %vm397, %v481, 0.0
        %v485 = vsel %vm398, %v483, 0.0
        %486 = vmatpush.xpose.msra.mxu0 0.0
        %487 = vmatpush.xpose.msra.mxu0 0.0
        %488 = vmatpush.xpose.msra.mxu0 0.0
        %489 = vmatpush.xpose.msra.mxu0 0.0
        %490 = vmatpush.xpose.msra.mxu0 0.0
        %491 = vmatpush.xpose.msra.mxu0 0.0
        %492 = vmatpush.xpose.msra.mxu0 0.0
        %493 = vmatpush.xpose.msra.mxu0 0.0
        %494 = vmatpush.xpose.msra.mxu0 0.0
        %495 = vmatpush.xpose.msra.mxu0 0.0
        %496 = vmatpush.xpose.msra.mxu0 0.0
        %497 = vmatpush.xpose.msra.mxu0 0.0
        %498 = vmatpush.xpose.msra.mxu0 0.0
        %499 = vmatpush.xpose.msra.mxu0 0.0
        %500 = vmatpush.xpose.msra.mxu0 %v405
        %501 = vmatpush.xpose.msra.mxu0 %v402
        %502 = vmatmul.f32.gmra.mxu0 %v402
        %v503 = vpop.f32.mrf.mxu0
        %v504 = vadd.f32 0.0, %v503
        %505 = vmatmul.f32.gmra.mxu0 %v405
        %v506 = vpop.f32.mrf.mxu0
        %v507 = vadd.f32 0.0, %v506
        %508 = vdwg.mxu0
        %v509 = vsub.f32 0.0, %v504
        %v510 = vsub.f32 0.0, %v507
        %v511 = vmul.f32 %v509, 1.442695
        %v512 = vpow.pop %v511
        %v513 = vmul.f32 %v510, 1.442695
        %v514 = vpow.pop %v513
        %v515 = vmul.f32 %v512, %v354
        %v516 = vmul.f32 %v514, %v355
        %517 = vmatpush.xpose.msra.mxu0 %v453
        %518 = vmatpush.xpose.msra.mxu0 %v450
        %519 = vmatpush.xpose.msra.mxu0 %v447
        %520 = vmatpush.xpose.msra.mxu0 %v444
        %521 = vmatpush.xpose.msra.mxu0 %v441
        %522 = vmatpush.xpose.msra.mxu0 %v438
        %523 = vmatpush.xpose.msra.mxu0 %v435
        %524 = vmatpush.xpose.msra.mxu0 %v432
        %525 = vmatpush.xpose.msra.mxu0 %v429
        %526 = vmatpush.xpose.msra.mxu0 %v426
        %527 = vmatpush.xpose.msra.mxu0 %v423
        %528 = vmatpush.xpose.msra.mxu0 %v420
        %529 = vmatpush.xpose.msra.mxu0 %v417
        %530 = vmatpush.xpose.msra.mxu0 %v414
        %531 = vmatpush.xpose.msra.mxu0 %v411
        %532 = vmatpush.xpose.msra.mxu0 %v408
        %533 = vmatmul.f32.gmra.mxu0 %v408
        %v534 = vpop.f32.mrf.mxu0
        %v535 = vadd.f32 0.0, %v534
        %536 = vmatmul.f32.gmra.mxu0 %v411
        %v537 = vpop.f32.mrf.mxu0
        %v538 = vadd.f32 0.0, %v537
        %539 = vmatmul.f32.gmra.mxu0 %v414
        %v540 = vpop.f32.mrf.mxu0
        %v541 = vadd.f32 0.0, %v540
        %542 = vmatmul.f32.gmra.mxu0 %v417
        %v543 = vpop.f32.mrf.mxu0
        %v544 = vadd.f32 0.0, %v543
        %545 = vmatmul.f32.gmra.mxu0 %v420
        %v546 = vpop.f32.mrf.mxu0
        %v547 = vadd.f32 0.0, %v546
        %548 = vmatmul.f32.gmra.mxu0 %v423
        %v549 = vpop.f32.mrf.mxu0
        %v550 = vadd.f32 0.0, %v549
        %551 = vmatmul.f32.gmra.mxu0 %v426
        %v552 = vpop.f32.mrf.mxu0
        %v553 = vadd.f32 0.0, %v552
        %554 = vmatmul.f32.gmra.mxu0 %v429
        %v555 = vpop.f32.mrf.mxu0
        %v556 = vadd.f32 0.0, %v555
        %557 = vmatmul.f32.gmra.mxu0 %v432
        %v558 = vpop.f32.mrf.mxu0
        %v559 = vadd.f32 0.0, %v558
        %560 = vmatmul.f32.gmra.mxu0 %v435
        %v561 = vpop.f32.mrf.mxu0
        %v562 = vadd.f32 0.0, %v561
        %563 = vmatmul.f32.gmra.mxu0 %v438
        %v564 = vpop.f32.mrf.mxu0
        %v565 = vadd.f32 0.0, %v564
        %566 = vmatmul.f32.gmra.mxu0 %v441
        %v567 = vpop.f32.mrf.mxu0
        %v568 = vadd.f32 0.0, %v567
        %569 = vmatmul.f32.gmra.mxu0 %v444
        %v570 = vpop.f32.mrf.mxu0
        %v571 = vadd.f32 0.0, %v570
        %572 = vmatmul.f32.gmra.mxu0 %v447
        %v573 = vpop.f32.mrf.mxu0
        %v574 = vadd.f32 0.0, %v573
        %575 = vmatmul.f32.gmra.mxu0 %v450
        %v576 = vpop.f32.mrf.mxu0
        %v577 = vadd.f32 0.0, %v576
        %578 = vmatmul.f32.gmra.mxu0 %v453
        %v579 = vpop.f32.mrf.mxu0
        %v580 = vadd.f32 0.0, %v579
        %581 = vdwg.mxu0
        %v582 = vsub.f32 0.0, %v535
        %v583 = vsub.f32 0.0, %v538
        %v584 = vsub.f32 0.0, %v541
        %v585 = vsub.f32 0.0, %v544
        %v586 = vsub.f32 0.0, %v547
        %v587 = vsub.f32 0.0, %v550
        %v588 = vsub.f32 0.0, %v553
        %v589 = vsub.f32 0.0, %v556
        %v590 = vsub.f32 0.0, %v559
        %v591 = vsub.f32 0.0, %v562
        %v592 = vsub.f32 0.0, %v565
        %v593 = vsub.f32 0.0, %v568
        %v594 = vsub.f32 0.0, %v571
        %v595 = vsub.f32 0.0, %v574
        %v596 = vsub.f32 0.0, %v577
        %v597 = vsub.f32 0.0, %v580
        %v598 = vmul.f32 %v582, 1.442695
        %v599 = vpow.pop %v598
        %v600 = vmul.f32 %v583, 1.442695
        %v601 = vpow.pop %v600
        %v602 = vmul.f32 %v584, 1.442695
        %v603 = vpow.pop %v602
        %v604 = vmul.f32 %v585, 1.442695
        %v605 = vpow.pop %v604
        %v606 = vmul.f32 %v586, 1.442695
        %v607 = vpow.pop %v606
        %v608 = vmul.f32 %v587, 1.442695
        %v609 = vpow.pop %v608
        %v610 = vmul.f32 %v588, 1.442695
        %v611 = vpow.pop %v610
        %v612 = vmul.f32 %v589, 1.442695
        %v613 = vpow.pop %v612
        %v614 = vmul.f32 %v590, 1.442695
        %v615 = vpow.pop %v614
        %v616 = vmul.f32 %v591, 1.442695
        %v617 = vpow.pop %v616
        %v618 = vmul.f32 %v592, 1.442695
        %v619 = vpow.pop %v618
        %v620 = vmul.f32 %v593, 1.442695
        %v621 = vpow.pop %v620
        %v622 = vmul.f32 %v594, 1.442695
        %v623 = vpow.pop %v622
        %v624 = vmul.f32 %v595, 1.442695
        %v625 = vpow.pop %v624
        %v626 = vmul.f32 %v596, 1.442695
        %v627 = vpow.pop %v626
        %v628 = vmul.f32 %v597, 1.442695
        %v629 = vpow.pop %v628
        %v630 = vmul.f32 %v599, %v372
        %v631 = vmul.f32 %v601, %v373
        %v632 = vmul.f32 %v603, %v374
        %v633 = vmul.f32 %v605, %v375
        %v634 = vmul.f32 %v607, %v376
        %v635 = vmul.f32 %v609, %v377
        %v636 = vmul.f32 %v611, %v378
        %v637 = vmul.f32 %v613, %v379
        %v638 = vmul.f32 %v615, %v380
        %v639 = vmul.f32 %v617, %v381
        %v640 = vmul.f32 %v619, %v382
        %v641 = vmul.f32 %v621, %v383
        %v642 = vmul.f32 %v623, %v384
        %v643 = vmul.f32 %v625, %v385
        %v644 = vmul.f32 %v627, %v386
        %v645 = vmul.f32 %v629, %v387
        %v646 = vmul.f32 %v515, %v515
        %v647 = vmul.f32 %v516, %v516
        %v648 = vmul.f32 %v630, %v630
        %v649 = vmul.f32 %v631, %v631
        %v650 = vmul.f32 %v632, %v632
        %v651 = vmul.f32 %v633, %v633
        %v652 = vmul.f32 %v634, %v634
        %v653 = vmul.f32 %v635, %v635
        %v654 = vmul.f32 %v636, %v636
        %v655 = vmul.f32 %v637, %v637
        %v656 = vmul.f32 %v638, %v638
        %v657 = vmul.f32 %v639, %v639
        %v658 = vmul.f32 %v640, %v640
        %v659 = vmul.f32 %v641, %v641
        %v660 = vmul.f32 %v642, %v642
        %v661 = vmul.f32 %v643, %v643
        %v662 = vmul.f32 %v644, %v644
        %v663 = vmul.f32 %v645, %v645
        %v664 = vsel %vm397, 0.00390625, 0.0
        %v665 = vsel %vm398, 0.00390625, 0.0
        loop: start=0, step=1, limit=10
        $region41: #{tpu_custom_call.1} parent=39 // loop_pre_header
          _
        $region42: #{tpu_custom_call.1} parent=39 // loop_header
          %s667 = sphi 0, %s671
          %p668 = scmp.ge.s32.totalorder %s667, 10
          %v672 = vphi %v664, %v1139
          %v673 = vphi %v665, %v1140
          %v674 = vphi 0.0625, %v1117
        $region43: #{tpu_custom_call.1} parent=39 // loop_header_branch
          %670 = sbr.rel (%p668) target = $region47
        $region44: #{tpu_custom_call.1} parent=39 // loop_body
          %675 = vadd.xlane.f32.xlu0 %v672
          %v676 = vpop.xlane.xlu0 %675
          %677 = vadd.xlane.f32.xlu0 %v673
          %v678 = vpop.xlane.xlu0 %677
          %v679 = vmul.f32 %v388, 16.0
          %v681 = vperm.slane %v679, 0
          %v683 = vsub.f32 %v676, %v681
          %v684 = vsub.f32 %v678, %v681
          %v685 = vadd.f32 %v672, %v673
          %v686 = vrot.slane %v685, 4
          %v687 = vadd.f32 %v685, %v686
          %v688 = vrot.slane %v687, 2
          %v689 = vadd.f32 %v687, %v688
          %v690 = vrot.slane %v689, 1
          %v691 = vadd.f32 %v689, %v690
          %692 = vset.pattern.permute.xlu0 0
          %693 = vperm.xlu0 %692, %v679
          %v694 = vpop.permute.xlu0 %693
          %v696 = vperm.slane %v694, 0
          %v697 = vsub.f32 %v691, %v696
          %v699 = vperm.slane %v388, 0
          %700 = vset.pattern.permute.xlu0 0
          %701 = vperm.xlu0 %700, %v699
          %v702 = vpop.permute.xlu0 %701
          %v704 = vsub.f32 %v672, %v702
          %v705 = vsub.f32 %v673, %v702
          %vm706 = vcmask 130048
          %v708 = vsel %vm706, %v646, 0
          %v711 = vsel %vm706, %v647, 0
          %713 = vmatpush.msra.mxu0 0.0
          %714 = vmatpush.msra.mxu0 0.0
          %715 = vmatpush.msra.mxu0 0.0
          %716 = vmatpush.msra.mxu0 0.0
          %717 = vmatpush.msra.mxu0 0.0
          %718 = vmatpush.msra.mxu0 0.0
          %719 = vmatpush.msra.mxu0 0.0
          %720 = vmatpush.msra.mxu0 0.0
          %721 = vmatpush.msra.mxu0 0.0
          %722 = vmatpush.msra.mxu0 0.0
          %723 = vmatpush.msra.mxu0 0.0
          %724 = vmatpush.msra.mxu0 0.0
          %725 = vmatpush.msra.mxu0 0.0
          %726 = vmatpush.msra.mxu0 0.0
          %727 = vmatpush.msra.mxu0 %v684
          %728 = vmatpush.msra.mxu0 %v683
          %729 = vmatmul.f32.gmra.mxu0 %v708
          %v730 = vpop.f32.mrf.mxu0
          %v731 = vadd.f32 0.0, %v730
          %732 = vmatmul.f32.gmra.mxu0 %v711
          %v733 = vpop.f32.mrf.mxu0
          %v734 = vadd.f32 0.0, %v733
          %735 = vdwg.mxu0
          %736 = vmatpush.msra.mxu0 %v663
          %737 = vmatpush.msra.mxu0 %v662
          %738 = vmatpush.msra.mxu0 %v661
          %739 = vmatpush.msra.mxu0 %v660
          %740 = vmatpush.msra.mxu0 %v659
          %741 = vmatpush.msra.mxu0 %v658
          %742 = vmatpush.msra.mxu0 %v657
          %743 = vmatpush.msra.mxu0 %v656
          %744 = vmatpush.msra.mxu0 %v655
          %745 = vmatpush.msra.mxu0 %v654
          %746 = vmatpush.msra.mxu0 %v653
          %747 = vmatpush.msra.mxu0 %v652
          %748 = vmatpush.msra.mxu0 %v651
          %749 = vmatpush.msra.mxu0 %v650
          %750 = vmatpush.msra.mxu0 %v649
          %751 = vmatpush.msra.mxu0 %v648
          %752 = vmatmul.f32.gmra.mxu0 %v697
          %v753 = vpop.f32.mrf.mxu0
          %v754 = vadd.f32 0.0, %v753
          %755 = vdwg.mxu0
          %757 = vset.pattern.permute.xlu0 0
          %758 = vperm.xlu0 %757, %v731
          %v759 = vpop.permute.xlu0 %758
          %762 = vset.pattern.permute.xlu0 0
          %763 = vperm.xlu0 %762, %v734
          %v764 = vpop.permute.xlu0 %763
          %v766 = vperm.slane %v754, 0
          %v767 = vadd.f32 %v759, %v766
          %v768 = vadd.f32 %v764, %v766
          %v770 = vsel %vm706, %v515, 0
          %v773 = vsel %vm706, %v516, 0
          %775 = vmatpush.msra.mxu0 0.0
          %776 = vmatpush.msra.mxu0 0.0
          %777 = vmatpush.msra.mxu0 0.0
          %778 = vmatpush.msra.mxu0 0.0
          %779 = vmatpush.msra.mxu0 0.0
          %780 = vmatpush.msra.mxu0 0.0
          %781 = vmatpush.msra.mxu0 0.0
          %782 = vmatpush.msra.mxu0 0.0
          %783 = vmatpush.msra.mxu0 0.0
          %784 = vmatpush.msra.mxu0 0.0
          %785 = vmatpush.msra.mxu0 0.0
          %786 = vmatpush.msra.mxu0 0.0
          %787 = vmatpush.msra.mxu0 0.0
          %788 = vmatpush.msra.mxu0 0.0
          %789 = vmatpush.msra.mxu0 %v705
          %790 = vmatpush.msra.mxu0 %v704
          %791 = vmatmul.f32.gmra.mxu0 %v770
          %v792 = vpop.f32.mrf.mxu0
          %v793 = vadd.f32 0.0, %v792
          %794 = vmatmul.f32.gmra.mxu0 %v773
          %v795 = vpop.f32.mrf.mxu0
          %v796 = vadd.f32 0.0, %v795
          %797 = vdwg.mxu0
          %798 = vmatpush.xpose.msra.mxu0 %v645
          %799 = vmatpush.xpose.msra.mxu0 %v644
          %800 = vmatpush.xpose.msra.mxu0 %v643
          %801 = vmatpush.xpose.msra.mxu0 %v642
          %802 = vmatpush.xpose.msra.mxu0 %v641
          %803 = vmatpush.xpose.msra.mxu0 %v640
          %804 = vmatpush.xpose.msra.mxu0 %v639
          %805 = vmatpush.xpose.msra.mxu0 %v638
          %806 = vmatpush.xpose.msra.mxu0 %v637
          %807 = vmatpush.xpose.msra.mxu0 %v636
          %808 = vmatpush.xpose.msra.mxu0 %v635
          %809 = vmatpush.xpose.msra.mxu0 %v634
          %810 = vmatpush.xpose.msra.mxu0 %v633
          %811 = vmatpush.xpose.msra.mxu0 %v632
          %812 = vmatpush.xpose.msra.mxu0 %v631
          %813 = vmatpush.xpose.msra.mxu0 %v630
          %814 = vmatmul.f32.gmra.mxu0 %v793
          %v815 = vpop.f32.mrf.mxu0
          %v816 = vadd.f32 0.0, %v815
          %817 = vmatmul.f32.gmra.mxu0 %v796
          %v818 = vpop.f32.mrf.mxu0
          %v819 = vadd.f32 0.0, %v818
          %820 = vdwg.mxu0
          %v821 = vmul.f32 %v816, 2.0
          %v822 = vmul.f32 %v819, 2.0
          %v823 = vsub.f32 %v767, %v821
          %v824 = vsub.f32 %v768, %v822
          %v825 = vmul.f32 %v823, 20.0
          %v826 = vmul.f32 %v824, 20.0
          %v827 = vadd.f32 %v484, %v825
          %v828 = vadd.f32 %v485, %v826
          %v829 = vsel %vm396, %v827, 1e+30
          %v830 = vsel %vm396, %v828, 1e+30
          %v831 = vsel %vm392, %v827, 1e+30
          %v832 = vsel %vm393, %v828, 1e+30
          %v833 = vsub.f32 %v829, %v674
          %v834 = vsub.f32 %v830, %v674
          %835 = vmin.xlane.f32.xlu0 %v833
          %v836 = vpop.xlane.xlu0 %835
          %837 = vmin.xlane.f32.xlu0 %v834
          %v838 = vpop.xlane.xlu0 %837
          %v839 = vsub.f32 %v836, %v833
          %v840 = vsub.f32 %v838, %v834
          %v841 = vmul.f32 %v839, 100.0
          %v842 = vmul.f32 %v840, 100.0
          %v843 = vmul.f32 %v841, 1.442695
          %v844 = vpow.pop %v843
          %v845 = vmul.f32 %v842, 1.442695
          %v846 = vpow.pop %v845
          %847 = vadd.xlane.f32.xlu0 %v844
          %v848 = vpop.xlane.xlu0 %847
          %849 = vadd.xlane.f32.xlu0 %v846
          %v850 = vpop.xlane.xlu0 %849
          %v851 = vlog2.pop %v848
          %v852 = vmul.f32 %v851, 0.6931472
          %v853 = vlog2.pop %v850
          %v854 = vmul.f32 %v853, 0.6931472
          %v855 = vmul.f32 %v852, 0.01
          %v856 = vmul.f32 %v854, 0.01
          %v857 = vsub.f32 %v836, %v855
          %v858 = vsub.f32 %v838, %v856
          %v859 = vadd.f32 %v857, -0.027725887
          %v860 = vadd.f32 %v858, -0.027725887
          %v861 = vsub.f32 %v831, %v859
          %v862 = vsub.f32 %v832, %v860
          %v863 = vmin.f32 %v861, %v862
          %v864 = vrot.slane %v863, 4
          %v865 = vmin.f32 %v863, %v864
          %v866 = vrot.slane %v865, 2
          %v867 = vmin.f32 %v865, %v866
          %v868 = vrot.slane %v867, 1
          %v869 = vmin.f32 %v867, %v868
          %v870 = vsub.f32 %v869, %v861
          %v871 = vsub.f32 %v869, %v862
          %v872 = vmul.f32 %v870, 100.0
          %v873 = vmul.f32 %v871, 100.0
          %v874 = vmul.f32 %v872, 1.442695
          %v875 = vpow.pop %v874
          %v876 = vmul.f32 %v873, 1.442695
          %v877 = vpow.pop %v876
          %v878 = vadd.f32 %v875, %v877
          %v879 = vrot.slane %v878, 4
          %v880 = vadd.f32 %v878, %v879
          %v881 = vrot.slane %v880, 2
          %v882 = vadd.f32 %v880, %v881
          %v883 = vrot.slane %v882, 1
          %v884 = vadd.f32 %v882, %v883
          %v885 = vlog2.pop %v884
          %v886 = vmul.f32 %v885, 0.6931472
          %v887 = vmul.f32 %v886, 0.01
          %v888 = vsub.f32 %v869, %v887
          %v889 = vadd.f32 %v888, -0.027725887
          %v890 = vsub.f32 %v829, %v889
          %v891 = vsub.f32 %v830, %v889
          %892 = vmin.xlane.f32.xlu0 %v890
          %v893 = vpop.xlane.xlu0 %892
          %894 = vmin.xlane.f32.xlu0 %v891
          %v895 = vpop.xlane.xlu0 %894
          %v896 = vsub.f32 %v893, %v890
          %v897 = vsub.f32 %v895, %v891
          %v898 = vmul.f32 %v896, 100.0
          %v899 = vmul.f32 %v897, 100.0
          %v900 = vmul.f32 %v898, 1.442695
          %v901 = vpow.pop %v900
          %v902 = vmul.f32 %v899, 1.442695
          %v903 = vpow.pop %v902
          %904 = vadd.xlane.f32.xlu0 %v901
          %v905 = vpop.xlane.xlu0 %904
          %906 = vadd.xlane.f32.xlu0 %v903
          %v907 = vpop.xlane.xlu0 %906
          %v908 = vlog2.pop %v905
          %v909 = vmul.f32 %v908, 0.6931472
          %v910 = vlog2.pop %v907
          %v911 = vmul.f32 %v910, 0.6931472
          %v912 = vmul.f32 %v909, 0.01
          %v913 = vmul.f32 %v911, 0.01
          %v914 = vsub.f32 %v893, %v912
          %v915 = vsub.f32 %v895, %v913
          %v916 = vadd.f32 %v914, -0.027725887
          %v917 = vadd.f32 %v915, -0.027725887
          %v918 = vsub.f32 %v831, %v916
          %v919 = vsub.f32 %v832, %v917
          %v920 = vmin.f32 %v918, %v919
          %v921 = vrot.slane %v920, 4
          %v922 = vmin.f32 %v920, %v921
          %v923 = vrot.slane %v922, 2
          %v924 = vmin.f32 %v922, %v923
          %v925 = vrot.slane %v924, 1
          %v926 = vmin.f32 %v924, %v925
          %v927 = vsub.f32 %v926, %v918
          %v928 = vsub.f32 %v926, %v919
          %v929 = vmul.f32 %v927, 100.0
          %v930 = vmul.f32 %v928, 100.0
          %v931 = vmul.f32 %v929, 1.442695
          %v932 = vpow.pop %v931
          %v933 = vmul.f32 %v930, 1.442695
          %v934 = vpow.pop %v933
          %v935 = vadd.f32 %v932, %v934
          %v936 = vrot.slane %v935, 4
          %v937 = vadd.f32 %v935, %v936
          %v938 = vrot.slane %v937, 2
          %v939 = vadd.f32 %v937, %v938
          %v940 = vrot.slane %v939, 1
          %v941 = vadd.f32 %v939, %v940
          %v942 = vlog2.pop %v941
          %v943 = vmul.f32 %v942, 0.6931472
          %v944 = vmul.f32 %v943, 0.01
          %v945 = vsub.f32 %v926, %v944
          %v946 = vadd.f32 %v945, -0.027725887
          %v947 = vsub.f32 %v829, %v946
          %v948 = vsub.f32 %v830, %v946
          %949 = vmin.xlane.f32.xlu0 %v947
          %v950 = vpop.xlane.xlu0 %949
          %951 = vmin.xlane.f32.xlu0 %v948
          %v952 = vpop.xlane.xlu0 %951
          %v953 = vsub.f32 %v950, %v947
          %v954 = vsub.f32 %v952, %v948
          %v955 = vmul.f32 %v953, 100.0
          %v956 = vmul.f32 %v954, 100.0
          %v957 = vmul.f32 %v955, 1.442695
          %v958 = vpow.pop %v957
          %v959 = vmul.f32 %v956, 1.442695
          %v960 = vpow.pop %v959
          %961 = vadd.xlane.f32.xlu0 %v958
          %v962 = vpop.xlane.xlu0 %961
          %963 = vadd.xlane.f32.xlu0 %v960
          %v964 = vpop.xlane.xlu0 %963
          %v965 = vlog2.pop %v962
          %v966 = vmul.f32 %v965, 0.6931472
          %v967 = vlog2.pop %v964
          %v968 = vmul.f32 %v967, 0.6931472
          %v969 = vmul.f32 %v966, 0.01
          %v970 = vmul.f32 %v968, 0.01
          %v971 = vsub.f32 %v950, %v969
          %v972 = vsub.f32 %v952, %v970
          %v973 = vadd.f32 %v971, -0.027725887
          %v974 = vadd.f32 %v972, -0.027725887
          %v975 = vsub.f32 %v831, %v973
          %v976 = vsub.f32 %v832, %v974
          %v977 = vmin.f32 %v975, %v976
          %v978 = vrot.slane %v977, 4
          %v979 = vmin.f32 %v977, %v978
          %v980 = vrot.slane %v979, 2
          %v981 = vmin.f32 %v979, %v980
          %v982 = vrot.slane %v981, 1
          %v983 = vmin.f32 %v981, %v982
          %v984 = vsub.f32 %v983, %v975
          %v985 = vsub.f32 %v983, %v976
          %v986 = vmul.f32 %v984, 100.0
          %v987 = vmul.f32 %v985, 100.0
          %v988 = vmul.f32 %v986, 1.442695
          %v989 = vpow.pop %v988
          %v990 = vmul.f32 %v987, 1.442695
          %v991 = vpow.pop %v990
          %v992 = vadd.f32 %v989, %v991
          %v993 = vrot.slane %v992, 4
          %v994 = vadd.f32 %v992, %v993
          %v995 = vrot.slane %v994, 2
          %v996 = vadd.f32 %v994, %v995
          %v997 = vrot.slane %v996, 1
          %v998 = vadd.f32 %v996, %v997
          %v999 = vlog2.pop %v998
          %v1000 = vmul.f32 %v999, 0.6931472
          %v1001 = vmul.f32 %v1000, 0.01
          %v1002 = vsub.f32 %v983, %v1001
          %v1003 = vadd.f32 %v1002, -0.027725887
          %v1004 = vsub.f32 %v829, %v1003
          %v1005 = vsub.f32 %v830, %v1003
          %1006 = vmin.xlane.f32.xlu0 %v1004
          %v1007 = vpop.xlane.xlu0 %1006
          %1008 = vmin.xlane.f32.xlu0 %v1005
          %v1009 = vpop.xlane.xlu0 %1008
          %v1010 = vsub.f32 %v1007, %v1004
          %v1011 = vsub.f32 %v1009, %v1005
          %v1012 = vmul.f32 %v1010, 100.0
          %v1013 = vmul.f32 %v1011, 100.0
          %v1014 = vmul.f32 %v1012, 1.442695
          %v1015 = vpow.pop %v1014
          %v1016 = vmul.f32 %v1013, 1.442695
          %v1017 = vpow.pop %v1016
          %1018 = vadd.xlane.f32.xlu0 %v1015
          %v1019 = vpop.xlane.xlu0 %1018
          %1020 = vadd.xlane.f32.xlu0 %v1017
          %v1021 = vpop.xlane.xlu0 %1020
          %v1022 = vlog2.pop %v1019
          %v1023 = vmul.f32 %v1022, 0.6931472
          %v1024 = vlog2.pop %v1021
          %v1025 = vmul.f32 %v1024, 0.6931472
          %v1026 = vmul.f32 %v1023, 0.01
          %v1027 = vmul.f32 %v1025, 0.01
          %v1028 = vsub.f32 %v1007, %v1026
          %v1029 = vsub.f32 %v1009, %v1027
          %v1030 = vadd.f32 %v1028, -0.027725887
          %v1031 = vadd.f32 %v1029, -0.027725887
          %v1032 = vsub.f32 %v831, %v1030
          %v1033 = vsub.f32 %v832, %v1031
          %v1034 = vmin.f32 %v1032, %v1033
          %v1035 = vrot.slane %v1034, 4
          %v1036 = vmin.f32 %v1034, %v1035
          %v1037 = vrot.slane %v1036, 2
          %v1038 = vmin.f32 %v1036, %v1037
          %v1039 = vrot.slane %v1038, 1
          %v1040 = vmin.f32 %v1038, %v1039
          %v1041 = vsub.f32 %v1040, %v1032
          %v1042 = vsub.f32 %v1040, %v1033
          %v1043 = vmul.f32 %v1041, 100.0
          %v1044 = vmul.f32 %v1042, 100.0
          %v1045 = vmul.f32 %v1043, 1.442695
          %v1046 = vpow.pop %v1045
          %v1047 = vmul.f32 %v1044, 1.442695
          %v1048 = vpow.pop %v1047
          %v1049 = vadd.f32 %v1046, %v1048
          %v1050 = vrot.slane %v1049, 4
          %v1051 = vadd.f32 %v1049, %v1050
          %v1052 = vrot.slane %v1051, 2
          %v1053 = vadd.f32 %v1051, %v1052
          %v1054 = vrot.slane %v1053, 1
          %v1055 = vadd.f32 %v1053, %v1054
          %v1056 = vlog2.pop %v1055
          %v1057 = vmul.f32 %v1056, 0.6931472
          %v1058 = vmul.f32 %v1057, 0.01
          %v1059 = vsub.f32 %v1040, %v1058
          %v1060 = vadd.f32 %v1059, -0.027725887
          %v1061 = vsub.f32 %v829, %v1060
          %v1062 = vsub.f32 %v830, %v1060
          %1063 = vmin.xlane.f32.xlu0 %v1061
          %v1064 = vpop.xlane.xlu0 %1063
          %1065 = vmin.xlane.f32.xlu0 %v1062
          %v1066 = vpop.xlane.xlu0 %1065
          %v1067 = vsub.f32 %v1064, %v1061
          %v1068 = vsub.f32 %v1066, %v1062
          %v1069 = vmul.f32 %v1067, 100.0
          %v1070 = vmul.f32 %v1068, 100.0
          %v1071 = vmul.f32 %v1069, 1.442695
          %v1072 = vpow.pop %v1071
          %v1073 = vmul.f32 %v1070, 1.442695
          %v1074 = vpow.pop %v1073
          %1075 = vadd.xlane.f32.xlu0 %v1072
          %v1076 = vpop.xlane.xlu0 %1075
          %1077 = vadd.xlane.f32.xlu0 %v1074
          %v1078 = vpop.xlane.xlu0 %1077
          %v1079 = vlog2.pop %v1076
          %v1080 = vmul.f32 %v1079, 0.6931472
          %v1081 = vlog2.pop %v1078
          %v1082 = vmul.f32 %v1081, 0.6931472
          %v1083 = vmul.f32 %v1080, 0.01
          %v1084 = vmul.f32 %v1082, 0.01
          %v1085 = vsub.f32 %v1064, %v1083
          %v1086 = vsub.f32 %v1066, %v1084
          %v1087 = vadd.f32 %v1085, -0.027725887
          %v1088 = vadd.f32 %v1086, -0.027725887
          %v1089 = vsub.f32 %v831, %v1087
          %v1090 = vsub.f32 %v832, %v1088
          %v1091 = vmin.f32 %v1089, %v1090
          %v1092 = vrot.slane %v1091, 4
          %v1093 = vmin.f32 %v1091, %v1092
          %v1094 = vrot.slane %v1093, 2
          %v1095 = vmin.f32 %v1093, %v1094
          %v1096 = vrot.slane %v1095, 1
          %v1097 = vmin.f32 %v1095, %v1096
          %v1098 = vsub.f32 %v1097, %v1089
          %v1099 = vsub.f32 %v1097, %v1090
          %v1100 = vmul.f32 %v1098, 100.0
          %v1101 = vmul.f32 %v1099, 100.0
          %v1102 = vmul.f32 %v1100, 1.442695
          %v1103 = vpow.pop %v1102
          %v1104 = vmul.f32 %v1101, 1.442695
          %v1105 = vpow.pop %v1104
          %v1106 = vadd.f32 %v1103, %v1105
          %v1107 = vrot.slane %v1106, 4
          %v1108 = vadd.f32 %v1106, %v1107
          %v1109 = vrot.slane %v1108, 2
          %v1110 = vadd.f32 %v1108, %v1109
          %v1111 = vrot.slane %v1110, 1
          %v1112 = vadd.f32 %v1110, %v1111
          %v1113 = vlog2.pop %v1112
          %v1114 = vmul.f32 %v1113, 0.6931472
          %v1115 = vmul.f32 %v1114, 0.01
          %v1116 = vsub.f32 %v1097, %v1115
          %v1117 = vadd.f32 %v1116, -0.027725887
          %v1118 = vrcp.pop %v1112
          %v1119 = vmul.f32 %v1112, %v1118
          %v1120 = vsub.f32 1.0, %v1119
          %v1121 = vmul.f32 %v1118, %v1120
          %v1122 = vadd.f32 %v1118, %v1121
          %vm1123 = vweird.f32 %v1112
          %vm1124 = vweird.f32 %v1118
          %vm1125 = vmor %vm1123, %vm1124
          %v1126 = vsel %vm1125, %v1118, %v1122
          %v1127 = vand.u32 2147483647, %v1112
          %vm1128 = vcmp.eq.f32.partialorder %v1127, 8.507059e+37
          %v1129 = vand.u32 %v1112, 2147483648
          %v1130 = vor.u32 1.1754944e-38, %v1129
          %v1131 = vsel %vm1128, %v1130, %v1126
          %v1132 = vmul.f32 %v399, %v1131
          %v1133 = vmul.f32 %v672, 0.05
          %v1134 = vmul.f32 %v673, 0.05
          %v1135 = vmul.f32 %v1103, %v1132
          %v1136 = vmul.f32 %v1105, %v1132
          %v1137 = vmul.f32 %v1135, 0.95
          %v1138 = vmul.f32 %v1136, 0.95
          %v1139 = vadd.f32 %v1133, %v1137
          %v1140 = vadd.f32 %v1134, %v1138
        $region45: #{tpu_custom_call.1} parent=39 // loop_footer
          %s671 = sadd.s32 1, %s667
        $region46: #{tpu_custom_call.1} parent=39 // loop_footer_branch
          %666 = sbr.rel target = $region42
        $region47: #{tpu_custom_call.1} parent=39 // loop_exit
          _
        %vm1141 = vcmask 130048
        %v1142 = vsel %vm1141, %v646, 0.0
        %1143 = vadd.xlane.f32.xlu0 %v1142
        %v1144 = vpop.xlane.xlu0 %1143
        %v1145 = vsel %vm1141, %v647, 0.0
        %1146 = vadd.xlane.f32.xlu0 %v1145
        %v1147 = vpop.xlane.xlu0 %1146
        %v1148 = vadd.f32 %v648, %v649
        %v1149 = vadd.f32 %v1148, %v650
        %v1150 = vadd.f32 %v1149, %v651
        %v1151 = vadd.f32 %v1150, %v652
        %v1152 = vadd.f32 %v1151, %v653
        %v1153 = vadd.f32 %v1152, %v654
        %v1154 = vadd.f32 %v1153, %v655
        %v1155 = vadd.f32 %v1154, %v656
        %v1156 = vadd.f32 %v1155, %v657
        %v1157 = vadd.f32 %v1156, %v658
        %v1158 = vadd.f32 %v1157, %v659
        %v1159 = vadd.f32 %v1158, %v660
        %v1160 = vadd.f32 %v1159, %v661
        %v1161 = vadd.f32 %v1160, %v662
        %v1162 = vadd.f32 %v1161, %v663
        %v1163 = vrot.slane %v1162, 4
        %v1164 = vadd.f32 %v1162, %v1163
        %v1165 = vrot.slane %v1164, 2
        %v1166 = vadd.f32 %v1164, %v1165
        %v1167 = vrot.slane %v1166, 1
        %v1168 = vadd.f32 %v1166, %v1167
        %v1169 = vsel %vm1141, %v515, 0.0
        %1170 = vadd.xlane.f32.xlu0 %v1169
        %v1171 = vpop.xlane.xlu0 %1170
        %v1172 = vsel %vm1141, %v516, 0.0
        %1173 = vadd.xlane.f32.xlu0 %v1172
        %v1174 = vpop.xlane.xlu0 %1173
        %1175 = vadd.xlane.f32.xlu0 %v630
        %v1176 = vpop.xlane.xlu0 %1175
        %1177 = vadd.xlane.f32.xlu0 %v631
        %v1178 = vpop.xlane.xlu0 %1177
        %1179 = vadd.xlane.f32.xlu0 %v632
        %v1180 = vpop.xlane.xlu0 %1179
        %1181 = vadd.xlane.f32.xlu0 %v633
        %v1182 = vpop.xlane.xlu0 %1181
        %1183 = vadd.xlane.f32.xlu0 %v634
        %v1184 = vpop.xlane.xlu0 %1183
        %1185 = vadd.xlane.f32.xlu0 %v635
        %v1186 = vpop.xlane.xlu0 %1185
        %1187 = vadd.xlane.f32.xlu0 %v636
        %v1188 = vpop.xlane.xlu0 %1187
        %1189 = vadd.xlane.f32.xlu0 %v637
        %v1190 = vpop.xlane.xlu0 %1189
        %1191 = vadd.xlane.f32.xlu0 %v638
        %v1192 = vpop.xlane.xlu0 %1191
        %1193 = vadd.xlane.f32.xlu0 %v639
        %v1194 = vpop.xlane.xlu0 %1193
        %1195 = vadd.xlane.f32.xlu0 %v640
        %v1196 = vpop.xlane.xlu0 %1195
        %1197 = vadd.xlane.f32.xlu0 %v641
        %v1198 = vpop.xlane.xlu0 %1197
        %1199 = vadd.xlane.f32.xlu0 %v642
        %v1200 = vpop.xlane.xlu0 %1199
        %1201 = vadd.xlane.f32.xlu0 %v643
        %v1202 = vpop.xlane.xlu0 %1201
        %1203 = vadd.xlane.f32.xlu0 %v644
        %v1204 = vpop.xlane.xlu0 %1203
        %1205 = vadd.xlane.f32.xlu0 %v645
        %v1206 = vpop.xlane.xlu0 %1205
        %1207 = vadd.xlane.f32.xlu0 %v672
        %v1208 = vpop.xlane.xlu0 %1207
        %1209 = vadd.xlane.f32.xlu0 %v673
        %v1210 = vpop.xlane.xlu0 %1209
        %v1211 = vadd.f32 %v672, %v673
        %v1212 = vrot.slane %v1211, 4
        %v1213 = vadd.f32 %v1211, %v1212
        %v1214 = vrot.slane %v1213, 2
        %v1215 = vadd.f32 %v1213, %v1214
        %v1216 = vrot.slane %v1215, 1
        %v1217 = vadd.f32 %v1215, %v1216
        %1218 = vadd.xlane.f32.xlu0 %v484
        %v1219 = vpop.xlane.xlu0 %1218
        %1220 = vadd.xlane.f32.xlu0 %v485
        %v1221 = vpop.xlane.xlu0 %1220
        %v1222 = vadd.f32 %v1219, %v1221
        %v1223 = vrot.slane %v1222, 4
        %v1224 = vadd.f32 %v1222, %v1223
        %v1225 = vrot.slane %v1224, 2
        %v1226 = vadd.f32 %v1224, %v1225
        %v1227 = vrot.slane %v1226, 1
        %v1228 = vadd.f32 %v1226, %v1227
        %v1229 = vmul.f32 %v1144, %v1208
        %v1230 = vmul.f32 %v1147, %v1210
        %v1231 = vadd.f32 %v1229, 0.0
        %v1232 = vadd.f32 %v1230, 0.0
        %v1233 = vadd.f32 %v1231, %v1232
        %v1234 = vrot.slane %v1233, 4
        %v1235 = vadd.f32 %v1233, %v1234
        %v1236 = vrot.slane %v1235, 2
        %v1237 = vadd.f32 %v1235, %v1236
        %v1238 = vrot.slane %v1237, 1
        %v1239 = vadd.f32 %v1237, %v1238
        %v1240 = vmul.f32 %v1239, 16.0
        %v1241 = vmul.f32 %v1168, %v1217
        %1242 = vadd.xlane.f32.xlu0 %v1241
        %v1243 = vpop.xlane.xlu0 %1242
        %v1244 = vadd.f32 %v1243, 0.0
        %v1245 = vmul.f32 %v1244, 16.0
        %v1246 = vadd.f32 %v1240, %v1245
        %1247 = vmatpush.msra.mxu0 %v1206
        %1248 = vmatpush.msra.mxu0 %v1204
        %1249 = vmatpush.msra.mxu0 %v1202
        %1250 = vmatpush.msra.mxu0 %v1200
        %1251 = vmatpush.msra.mxu0 %v1198
        %1252 = vmatpush.msra.mxu0 %v1196
        %1253 = vmatpush.msra.mxu0 %v1194
        %1254 = vmatpush.msra.mxu0 %v1192
        %1255 = vmatpush.msra.mxu0 %v1190
        %1256 = vmatpush.msra.mxu0 %v1188
        %1257 = vmatpush.msra.mxu0 %v1186
        %1258 = vmatpush.msra.mxu0 %v1184
        %1259 = vmatpush.msra.mxu0 %v1182
        %1260 = vmatpush.msra.mxu0 %v1180
        %1261 = vmatpush.msra.mxu0 %v1178
        %1262 = vmatpush.msra.mxu0 %v1176
        %1263 = vmatmul.f32.gmra.mxu0 %v672
        %v1264 = vpop.f32.mrf.mxu0
        %v1265 = vadd.f32 0.0, %v1264
        %1266 = vmatmul.f32.gmra.mxu0 %v673
        %v1267 = vpop.f32.mrf.mxu0
        %v1268 = vadd.f32 0.0, %v1267
        %1269 = vdwg.mxu0
        %v1270 = vmul.f32 %v1171, %v1265
        %v1271 = vmul.f32 %v1174, %v1268
        %v1272 = vadd.f32 %v1270, 0.0
        %v1273 = vadd.f32 %v1271, 0.0
        %vm1274 = vcmask 7168
        %v1275 = vsel %vm1274, %v1272, 0.0
        %v1276 = vsel %vm1274, %v1273, 0.0
        %v1277 = vadd.f32 %v1275, %v1276
        %v1278 = vrot.slane %v1277, 4
        %v1279 = vadd.f32 %v1277, %v1278
        %v1280 = vrot.slane %v1279, 2
        %v1281 = vadd.f32 %v1279, %v1280
        %v1282 = vrot.slane %v1281, 1
        %v1283 = vadd.f32 %v1281, %v1282
        %v1284 = vmul.f32 %v1283, 2.0
        %v1285 = vsub.f32 %v1246, %v1284
        %v1286 = vadd.f32 %v1144, %v1147
        %v1287 = vrot.slane %v1286, 4
        %v1288 = vadd.f32 %v1286, %v1287
        %v1289 = vrot.slane %v1288, 2
        %v1290 = vadd.f32 %v1288, %v1289
        %v1291 = vrot.slane %v1290, 1
        %v1292 = vadd.f32 %v1290, %v1291
        %v1293 = vmul.f32 %v1292, 256.0
        %1294 = vadd.xlane.f32.xlu0 %v648
        %v1295 = vpop.xlane.xlu0 %1294
        %1296 = vadd.xlane.f32.xlu0 %v649
        %v1297 = vpop.xlane.xlu0 %1296
        %1298 = vadd.xlane.f32.xlu0 %v650
        %v1299 = vpop.xlane.xlu0 %1298
        %1300 = vadd.xlane.f32.xlu0 %v651
        %v1301 = vpop.xlane.xlu0 %1300
        %1302 = vadd.xlane.f32.xlu0 %v652
        %v1303 = vpop.xlane.xlu0 %1302
        %1304 = vadd.xlane.f32.xlu0 %v653
        %v1305 = vpop.xlane.xlu0 %1304
        %1306 = vadd.xlane.f32.xlu0 %v654
        %v1307 = vpop.xlane.xlu0 %1306
        %1308 = vadd.xlane.f32.xlu0 %v655
        %v1309 = vpop.xlane.xlu0 %1308
        %1310 = vadd.xlane.f32.xlu0 %v656
        %v1311 = vpop.xlane.xlu0 %1310
        %1312 = vadd.xlane.f32.xlu0 %v657
        %v1313 = vpop.xlane.xlu0 %1312
        %1314 = vadd.xlane.f32.xlu0 %v658
        %v1315 = vpop.xlane.xlu0 %1314
        %1316 = vadd.xlane.f32.xlu0 %v659
        %v1317 = vpop.xlane.xlu0 %1316
        %1318 = vadd.xlane.f32.xlu0 %v660
        %v1319 = vpop.xlane.xlu0 %1318
        %1320 = vadd.xlane.f32.xlu0 %v661
        %v1321 = vpop.xlane.xlu0 %1320
        %1322 = vadd.xlane.f32.xlu0 %v662
        %v1323 = vpop.xlane.xlu0 %1322
        %1324 = vadd.xlane.f32.xlu0 %v663
        %v1325 = vpop.xlane.xlu0 %1324
        %v1326 = vadd.f32 %v1295, %v1297
        %v1327 = vadd.f32 %v1326, %v1299
        %v1328 = vadd.f32 %v1327, %v1301
        %v1329 = vadd.f32 %v1328, %v1303
        %v1330 = vadd.f32 %v1329, %v1305
        %v1331 = vadd.f32 %v1330, %v1307
        %v1332 = vadd.f32 %v1331, %v1309
        %v1333 = vadd.f32 %v1332, %v1311
        %v1334 = vadd.f32 %v1333, %v1313
        %v1335 = vadd.f32 %v1334, %v1315
        %v1336 = vadd.f32 %v1335, %v1317
        %v1337 = vadd.f32 %v1336, %v1319
        %v1338 = vadd.f32 %v1337, %v1321
        %v1339 = vadd.f32 %v1338, %v1323
        %v1340 = vadd.f32 %v1339, %v1325
        %v1341 = vrot.slane %v1340, 4
        %v1342 = vadd.f32 %v1340, %v1341
        %v1343 = vrot.slane %v1342, 2
        %v1344 = vadd.f32 %v1342, %v1343
        %v1345 = vrot.slane %v1344, 1
        %v1346 = vadd.f32 %v1344, %v1345
        %v1347 = vmul.f32 %v1346, 256.0
        %v1348 = vadd.f32 %v1293, %v1347
        %v1349 = vadd.f32 %v1171, %v1174
        %v1350 = vrot.slane %v1349, 4
        %v1351 = vadd.f32 %v1349, %v1350
        %v1352 = vrot.slane %v1351, 2
        %v1353 = vadd.f32 %v1351, %v1352
        %v1354 = vrot.slane %v1353, 1
        %v1355 = vadd.f32 %v1353, %v1354
        %v1356 = vmul.f32 %v1355, 2.0
        %v1357 = vadd.f32 %v1176, %v1178
        %v1358 = vadd.f32 %v1357, %v1180
        %v1359 = vadd.f32 %v1358, %v1182
        %v1360 = vadd.f32 %v1359, %v1184
        %v1361 = vadd.f32 %v1360, %v1186
        %v1362 = vadd.f32 %v1361, %v1188
        %v1363 = vadd.f32 %v1362, %v1190
        %v1364 = vadd.f32 %v1363, %v1192
        %v1365 = vadd.f32 %v1364, %v1194
        %v1366 = vadd.f32 %v1365, %v1196
        %v1367 = vadd.f32 %v1366, %v1198
        %v1368 = vadd.f32 %v1367, %v1200
        %v1369 = vadd.f32 %v1368, %v1202
        %v1370 = vadd.f32 %v1369, %v1204
        %v1371 = vadd.f32 %v1370, %v1206
        %v1372 = vrot.slane %v1371, 4
        %v1373 = vadd.f32 %v1371, %v1372
        %v1374 = vrot.slane %v1373, 2
        %v1375 = vadd.f32 %v1373, %v1374
        %v1376 = vrot.slane %v1375, 1
        %v1377 = vadd.f32 %v1375, %v1376
        %v1378 = vmul.f32 %v1356, %v1377
        %v1379 = vsub.f32 %v1348, %v1378
        %v1380 = vmul.f32 %v1285, 40.0
        %v1381 = vadd.f32 %v1228, %v1380
        %v1382 = vmul.f32 %v1379, 40.0
        %v1383 = vrcp.pop %v1382
        %v1384 = vmul.f32 %v1382, %v1383
        %v1385 = vsub.f32 1.0, %v1384
        %v1386 = vmul.f32 %v1383, %v1385
        %v1387 = vadd.f32 %v1383, %v1386
        %vm1388 = vweird.f32 %v1382
        %vm1389 = vweird.f32 %v1383
        %vm1390 = vmor %vm1388, %vm1389
        %v1391 = vsel %vm1390, %v1383, %v1387
        %v1392 = vand.u32 2147483647, %v1382
        %vm1393 = vcmp.eq.f32.partialorder %v1392, 8.507059e+37
        %v1394 = vand.u32 %v1382, 2147483648
        %v1395 = vor.u32 1.1754944e-38, %v1394
        %v1396 = vsel %vm1393, %v1395, %v1391
        %v1397 = vmul.f32 %v1381, %v1396
        %v1398 = vmul.f32 %v1397, 0.05
        %v1399 = vmul.f32 %v388, 0.95
        %v1400 = vadd.f32 %v1398, %v1399
        %s1402 = vtos %v1400
        %v1403 = vstv %s1402
        %v1405 = vsub.f32 %v672, %v1403
        %v1406 = vsub.f32 %v673, %v1403
        %v1407 = vsel %vm397, %v1405, 0.0
        %v1408 = vsel %vm398, %v1406, 0.0
        %v1409 = vmul.f32 %v484, %v1407
        %v1410 = vmul.f32 %v485, %v1408
        %1411 = vadd.xlane.f32.xlu0 %v1409
        %v1412 = vpop.xlane.xlu0 %1411
        %1413 = vadd.xlane.f32.xlu0 %v1410
        %v1414 = vpop.xlane.xlu0 %1413
        %v1415 = vadd.f32 %v1412, %v1414
        %v1416 = vrot.slane %v1415, 4
        %v1417 = vadd.f32 %v1415, %v1416
        %v1418 = vrot.slane %v1417, 2
        %v1419 = vadd.f32 %v1417, %v1418
        %v1420 = vrot.slane %v1419, 1
        %v1421 = vadd.f32 %v1419, %v1420
        %1422 = vadd.xlane.f32.xlu0 %v1407
        %v1423 = vpop.xlane.xlu0 %1422
        %1424 = vadd.xlane.f32.xlu0 %v1408
        %v1425 = vpop.xlane.xlu0 %1424
        %v1426 = vadd.f32 %v1407, %v1408
        %v1427 = vrot.slane %v1426, 4
        %v1428 = vadd.f32 %v1426, %v1427
        %v1429 = vrot.slane %v1428, 2
        %v1430 = vadd.f32 %v1428, %v1429
        %v1431 = vrot.slane %v1430, 1
        %v1432 = vadd.f32 %v1430, %v1431
        %v1434 = vsel %vm1141, %v646, 0
        %v1437 = vsel %vm1141, %v647, 0
        %1439 = vmatpush.msra.mxu0 0.0
        %1440 = vmatpush.msra.mxu0 0.0
        %1441 = vmatpush.msra.mxu0 0.0
        %1442 = vmatpush.msra.mxu0 0.0
        %1443 = vmatpush.msra.mxu0 0.0
        %1444 = vmatpush.msra.mxu0 0.0
        %1445 = vmatpush.msra.mxu0 0.0
        %1446 = vmatpush.msra.mxu0 0.0
        %1447 = vmatpush.msra.mxu0 0.0
        %1448 = vmatpush.msra.mxu0 0.0
        %1449 = vmatpush.msra.mxu0 0.0
        %1450 = vmatpush.msra.mxu0 0.0
        %1451 = vmatpush.msra.mxu0 0.0
        %1452 = vmatpush.msra.mxu0 0.0
        %1453 = vmatpush.msra.mxu0 %v1425
        %1454 = vmatpush.msra.mxu0 %v1423
        %1455 = vmatmul.f32.gmra.mxu0 %v1434
        %v1456 = vpop.f32.mrf.mxu0
        %v1457 = vadd.f32 0.0, %v1456
        %1458 = vmatmul.f32.gmra.mxu0 %v1437
        %v1459 = vpop.f32.mrf.mxu0
        %v1460 = vadd.f32 0.0, %v1459
        %1461 = vdwg.mxu0
        %1462 = vmatpush.msra.mxu0 %v663
        %1463 = vmatpush.msra.mxu0 %v662
        %1464 = vmatpush.msra.mxu0 %v661
        %1465 = vmatpush.msra.mxu0 %v660
        %1466 = vmatpush.msra.mxu0 %v659
        %1467 = vmatpush.msra.mxu0 %v658
        %1468 = vmatpush.msra.mxu0 %v657
        %1469 = vmatpush.msra.mxu0 %v656
        %1470 = vmatpush.msra.mxu0 %v655
        %1471 = vmatpush.msra.mxu0 %v654
        %1472 = vmatpush.msra.mxu0 %v653
        %1473 = vmatpush.msra.mxu0 %v652
        %1474 = vmatpush.msra.mxu0 %v651
        %1475 = vmatpush.msra.mxu0 %v650
        %1476 = vmatpush.msra.mxu0 %v649
        %1477 = vmatpush.msra.mxu0 %v648
        %1478 = vmatmul.f32.gmra.mxu0 %v1432
        %v1479 = vpop.f32.mrf.mxu0
        %v1480 = vadd.f32 0.0, %v1479
        %1481 = vdwg.mxu0
        %1483 = vset.pattern.permute.xlu0 0
        %1484 = vperm.xlu0 %1483, %v1457
        %v1485 = vpop.permute.xlu0 %1484
        %1488 = vset.pattern.permute.xlu0 0
        %1489 = vperm.xlu0 %1488, %v1460
        %v1490 = vpop.permute.xlu0 %1489
        %v1492 = vperm.slane %v1480, 0
        %v1493 = vadd.f32 %v1485, %v1492
        %v1494 = vadd.f32 %v1490, %v1492
        %v1496 = vsel %vm1141, %v515, 0
        %v1499 = vsel %vm1141, %v516, 0
        %1501 = vmatpush.msra.mxu0 0.0
        %1502 = vmatpush.msra.mxu0 0.0
        %1503 = vmatpush.msra.mxu0 0.0
        %1504 = vmatpush.msra.mxu0 0.0
        %1505 = vmatpush.msra.mxu0 0.0
        %1506 = vmatpush.msra.mxu0 0.0
        %1507 = vmatpush.msra.mxu0 0.0
        %1508 = vmatpush.msra.mxu0 0.0
        %1509 = vmatpush.msra.mxu0 0.0
        %1510 = vmatpush.msra.mxu0 0.0
        %1511 = vmatpush.msra.mxu0 0.0
        %1512 = vmatpush.msra.mxu0 0.0
        %1513 = vmatpush.msra.mxu0 0.0
        %1514 = vmatpush.msra.mxu0 0.0
        %1515 = vmatpush.msra.mxu0 %v1408
        %1516 = vmatpush.msra.mxu0 %v1407
        %1517 = vmatmul.f32.gmra.mxu0 %v1496
        %v1518 = vpop.f32.mrf.mxu0
        %v1519 = vadd.f32 0.0, %v1518
        %1520 = vmatmul.f32.gmra.mxu0 %v1499
        %v1521 = vpop.f32.mrf.mxu0
        %v1522 = vadd.f32 0.0, %v1521
        %1523 = vdwg.mxu0
        %1524 = vmatpush.xpose.msra.mxu0 %v645
        %1525 = vmatpush.xpose.msra.mxu0 %v644
        %1526 = vmatpush.xpose.msra.mxu0 %v643
        %1527 = vmatpush.xpose.msra.mxu0 %v642
        %1528 = vmatpush.xpose.msra.mxu0 %v641
        %1529 = vmatpush.xpose.msra.mxu0 %v640
        %1530 = vmatpush.xpose.msra.mxu0 %v639
        %1531 = vmatpush.xpose.msra.mxu0 %v638
        %1532 = vmatpush.xpose.msra.mxu0 %v637
        %1533 = vmatpush.xpose.msra.mxu0 %v636
        %1534 = vmatpush.xpose.msra.mxu0 %v635
        %1535 = vmatpush.xpose.msra.mxu0 %v634
        %1536 = vmatpush.xpose.msra.mxu0 %v633
        %1537 = vmatpush.xpose.msra.mxu0 %v632
        %1538 = vmatpush.xpose.msra.mxu0 %v631
        %1539 = vmatpush.xpose.msra.mxu0 %v630
        %1540 = vmatmul.f32.gmra.mxu0 %v1519
        %v1541 = vpop.f32.mrf.mxu0
        %v1542 = vadd.f32 0.0, %v1541
        %1543 = vmatmul.f32.gmra.mxu0 %v1522
        %v1544 = vpop.f32.mrf.mxu0
        %v1545 = vadd.f32 0.0, %v1544
        %1546 = vdwg.mxu0
        %v1547 = vmul.f32 %v1542, 2.0
        %v1548 = vmul.f32 %v1545, 2.0
        %v1549 = vsub.f32 %v1493, %v1547
        %v1550 = vsub.f32 %v1494, %v1548
        %v1551 = vmul.f32 %v1549, %v1407
        %v1552 = vmul.f32 %v1550, %v1408
        %1553 = vadd.xlane.f32.xlu0 %v1551
        %v1554 = vpop.xlane.xlu0 %1553
        %1555 = vadd.xlane.f32.xlu0 %v1552
        %v1556 = vpop.xlane.xlu0 %1555
        %v1557 = vadd.f32 %v1554, %v1556
        %v1558 = vrot.slane %v1557, 4
        %v1559 = vadd.f32 %v1557, %v1558
        %v1560 = vrot.slane %v1559, 2
        %v1561 = vadd.f32 %v1559, %v1560
        %v1562 = vrot.slane %v1561, 1
        %v1563 = vadd.f32 %v1561, %v1562
        %v1564 = vmul.f32 %v1563, 20.0
        %v1565 = vadd.f32 %v1421, %v1564
        %v1566 = vadd.f32 %v1565, 20.0
        %1567 = vst [vmem:[%s304] sm:$0xff] %v672
        %1568 = vst [vmem:[%s304 + $0x8] sm:$0xff] %v673
        %vm1569 = vcmp.eq.s32.totalorder %v395, 0
        %v1570 = vsel %vm1569, %v1566, 0.0
        %vm1571 = vcmp.eq.s32.totalorder %v395, 1
        %1572 = vset.pattern.permute.xlu0 0
        %1573 = vperm.xlu0 %1572, %v1400
        %v1574 = vpop.permute.xlu0 %1573
        %v1576 = vsel %vm1571, %v1574, 0.0
        %v1577 = vadd.f32 %v1570, %v1576
        %1578 = vst [vmem:[%s310] sm:$0x1] %v1577
        %s1579 = sand.u32 %s162, 1
        %s1580 = scalar_lea.sflag [#allocation3], %s1579
        %s1581 = sand.u32 %s162, 1
        %s1582 = smul.addr %s1581, 16
        %s1583 = scalar_lea.vmem [#allocation2], %s1582
        %s1584 = sand.u32 %s188, 1
        %s1585 = scalar_lea.sflag [#allocation5], %s1584
        %s1586 = sand.u32 %s188, 1
        %s1587 = scalar_lea.vmem [#allocation4], %s1586
        // Predicated region
        $region48: #{tpu_custom_call.1} parent=39 // pred_check
          %p1588 = pneg %p172
        $region49: #{tpu_custom_call.1} parent=39 // pred_check_branch
          %1590 = sbr.rel (%p1588) target = $region51
        $region50: #{tpu_custom_call.1} parent=39 // pred_region
          %1592 = vsyncadd %s1580, 0
          %s1593 = smul.addr %s24, 2
          %s1594 = smul.addr %s1593, 8
          %s1595 = scalar_lea.hbm %s5, %s1594
          %s1596 = sshll.u32 %s1583, 4
          %s1597 = int_to_ptr.vmem [resolvable:$true] %s1596
          %s1598 = sshll.u32 %s1595, 4
          %s1599 = int_to_ptr.hbm [resolvable:$true] %s1598
          %1604 = dma.vmem_to_hbm [thread:$0]  %s1597, 256, %s1599, %s1580, 128, 128, 8
        $region51: #{tpu_custom_call.1} parent=39 // pred_fallthru
          _
        // Predicated region
        $region52: #{tpu_custom_call.1} parent=39 // pred_check
          %p1605 = pneg %p198
        $region53: #{tpu_custom_call.1} parent=39 // pred_check_branch
          %1607 = sbr.rel (%p1605) target = $region55
        $region54: #{tpu_custom_call.1} parent=39 // pred_region
          %1609 = vsyncadd %s1585, 0
          %s1610 = scalar_lea.hbm %s6, %s24
          %s1612 = sshll.u32 %s1587, 4
          %s1613 = int_to_ptr.vmem [resolvable:$true] %s1612
          %s1614 = sshll.u32 %s1610, 4
          %s1615 = int_to_ptr.hbm [resolvable:$true] %s1614
          %1617 = dma.vmem_to_hbm [thread:$0]  %s1613, 16, %s1615, %s1585
        $region55: #{tpu_custom_call.1} parent=39 // pred_fallthru
          _
      $region40: #{tpu_custom_call.1} parent=5 // pred_fallthru
        _
      %p1618 = scmp.le.s32.totalorder 2, %s19
      // Predicated region
      $region56: #{tpu_custom_call.1} parent=5 // pred_check
        %p1619 = pneg %p1618
      $region57: #{tpu_custom_call.1} parent=5 // pred_check_branch
        %1621 = sbr.rel (%p1619) target = $region59
      $region58: #{tpu_custom_call.1} parent=5 // pred_region
        %s1622 = ssub.s32 %s19, 2
        // Predicated region
        $region60: #{tpu_custom_call.1} parent=58 // pred_check
          %p1623 = pneg %p178
        $region61: #{tpu_custom_call.1} parent=58 // pred_check_branch
          %1625 = sbr.rel (%p1623) target = $region63
        $region62: #{tpu_custom_call.1} parent=58 // pred_region
          %s1626 = sand.u32 %s163, 1
          %s1627 = scalar_lea.sflag [#allocation3], %s1626
          %s1628 = sand.u32 %s163, 1
          %s1629 = smul.addr %s1628, 16
          %s1630 = scalar_lea.vmem [#allocation2], %s1629
          %1632 = dma.done %s1627, 256
        $region63: #{tpu_custom_call.1} parent=58 // pred_fallthru
          _
        // Predicated region
        $region64: #{tpu_custom_call.1} parent=58 // pred_check
          %p1633 = pneg %p204
        $region65: #{tpu_custom_call.1} parent=58 // pred_check_branch
          %1635 = sbr.rel (%p1633) target = $region67
        $region66: #{tpu_custom_call.1} parent=58 // pred_region
          %s1636 = sand.u32 %s189, 1
          %s1637 = scalar_lea.sflag [#allocation5], %s1636
          %s1638 = sand.u32 %s189, 1
          %s1639 = scalar_lea.vmem [#allocation4], %s1638
          %1641 = dma.done %s1637, 16
        $region67: #{tpu_custom_call.1} parent=58 // pred_fallthru
          _
      $region59: #{tpu_custom_call.1} parent=5 // pred_fallthru
        _
    $region6: #{tpu_custom_call.1} parent=1 // loop_footer
      %s23 = sadd.s32 1, %s19
    $region7: #{tpu_custom_call.1} parent=1 // loop_footer_branch
      %18 = sbr.rel target = $region3
    $region8: #{tpu_custom_call.1} parent=1 // loop_exit
      _
    %1642 = vsyncpa [#allocation3], 1
    %s1643 = scalar_lea.sflag [#allocation3], 1
    %1644 = vsyncpa %s1643, 1
    %1645 = vsyncpa [#allocation5], 1
    %s1646 = scalar_lea.sflag [#allocation5], 1
    %1647 = vsyncpa %s1646, 1

</llo_original>
